<compile_context>
chip_gen: v6e
topology: v6e:2x2x1
jax: 0.10.0
libtpu: 0.0.40
codegen_flags: <defaults>
</compile_context>

<pallas_src>
import functools

import jax
import jax.numpy as jnp
from jax.experimental import pallas as pl
from jax.experimental.pallas import tpu as pltpu


# --------------------------------------------------------------------------------------
# In-kernel helpers
# --------------------------------------------------------------------------------------
def _sigmoid(x):
    # Numerically safe sigmoid on the EUP (tanh) slot; avoids inf from exp(-x).
    return 0.5 * (jnp.tanh(0.5 * x) + 1.0)


def _silu(x):
    return x * _sigmoid(x)


# --------------------------------------------------------------------------------------
# Pallas kernel: whole CSWF forward for one (batch, spatial-tile) block, all in VMEM.
#   r_ref, c_ref : [1, C, T]   bf16
#   w*           : [Cout, Cin] bf16 (BN-folded, PyTorch-native orientation)
#   b*           : [Cout, 1]   f32  (BN-folded bias, broadcasts across lanes)
#   o_ref        : [1, Cout, T] f32
# --------------------------------------------------------------------------------------
def _cswf_kernel(r_ref, c_ref,
                 w1a_ref, b1a_ref, w1b_ref, b1b_ref,
                 w2a_ref, b2a_ref, w2b_ref, b2b_ref,
                 w3a_ref, b3a_ref, w3b_ref, b3b_ref,
                 o_ref):
    r = r_ref[0].astype(jnp.float32)            # [C, T] f32
    c = c_ref[0].astype(jnp.float32)            # [C, T] f32

    def mm(w_ref, x_bf16, b_ref):
        # dot(W[Cout,Cin], X[Cin,T]) -> f32 [Cout, T], spatial dim lane-dense.
        acc = jnp.dot(w_ref[...], x_bf16, preferred_element_type=jnp.float32)
        return acc + b_ref[...]

    # conv_1: BaseConv(C, C/2, silu) -> BaseConv(C/2, C, silu) on (r + c)
    x = (r + c).astype(jnp.bfloat16)
    h = _silu(mm(w1a_ref, x, b1a_ref)).astype(jnp.bfloat16)
    h = _silu(mm(w1b_ref, h, b1b_ref)).astype(jnp.bfloat16)

    # conv_2: BaseConv(C, C/2, silu) -> BaseConv(C/2, C, sigmoid) -> gate m
    h = _silu(mm(w2a_ref, h, b2a_ref)).astype(jnp.bfloat16)
    m = _sigmoid(mm(w2b_ref, h, b2b_ref))       # f32 gate in [0, 1], [C, T]

    # gated mix (f32, rewritten as r + m*(c - r)), then
    # conv: BaseConv(C, C/2, silu) -> BaseConv(C/2, Cout, silu)
    fused = (r + m * (c - r)).astype(jnp.bfloat16)
    h = _silu(mm(w3a_ref, fused, b3a_ref)).astype(jnp.bfloat16)
    o = _silu(mm(w3b_ref, h, b3b_ref))          # f32 [Cout, T]

    o_ref[0] = o.astype(o_ref.dtype)


# --------------------------------------------------------------------------------------
# Host-side wrapper
# --------------------------------------------------------------------------------------
_PARAM_ORDER = ("w1a", "b1a", "w1b", "b1b",
                "w2a", "b2a", "w2b", "b2b",
                "w3a", "b3a", "w3b", "b3b")


def _pick_t(hw, b):
    """Pick spatial tile T (lane axis). Prefer >=4 total grid steps (>=2 per v7x
    TensorCore), then the biggest divisor-aligned tile; pad only as a last resort."""
    if hw % 128 == 0:
        for min_steps in (4, 2, 1):
            for t in (1024, 512, 256, 128):
                if hw % t == 0 and b * (hw // t) >= min_steps:
                    return t, hw
    t = 128
    return t, pl.cdiv(hw, t) * t


def _cswf_pallas(params, r3, c3, T):
    B, C, HW = r3.shape
    Cout = params["w3b"].shape[0]
    weights = [params[k] for k in _PARAM_ORDER]

    def w_spec(arr):
        # Constant index_map: weights/biases resident in VMEM across all grid steps.
        return pl.BlockSpec(arr.shape, lambda b, t: (0, 0))

    return pl.pallas_call(
        _cswf_kernel,
        out_shape=jax.ShapeDtypeStruct((B, Cout, HW), jnp.float32),
        grid=(B, HW // T),
        in_specs=[pl.BlockSpec((1, C, T), lambda b, t: (b, 0, t)),
                  pl.BlockSpec((1, C, T), lambda b, t: (b, 0, t))]
                 + [w_spec(w) for w in weights],
        out_specs=pl.BlockSpec((1, Cout, T), lambda b, t: (b, 0, t)),
        compiler_params=pltpu.CompilerParams(
            dimension_semantics=("parallel", "parallel")),
    )(r3, c3, *weights)


def cswf_forward(params, r_nchw, c_nchw):
    """r_feat, c_feat: NCHW (bf16 preferred, f32 accepted) -> NCHW f32."""
    B, C, H, W = r_nchw.shape
    hw = H * W
    # Free reshape (no transpose); bf16 HBM I/O for the kernel inputs.
    r3 = r_nchw.reshape(B, C, hw).astype(jnp.bfloat16)
    c3 = c_nchw.reshape(B, C, hw).astype(jnp.bfloat16)
    T, hw_pad = _pick_t(hw, B)
    if hw_pad != hw:
        pad = ((0, 0), (0, 0), (0, hw_pad - hw))
        r3 = jnp.pad(r3, pad)
        c3 = jnp.pad(c3, pad)
    out3 = _cswf_pallas(params, r3, c3, T)
    if hw_pad != hw:
        out3 = out3[:, :, :hw]
    Cout = params["w3b"].shape[0]
    return out3.reshape(B, Cout, H, W)


# --------------------------------------------------------------------------------------
# Deterministic parameter construction: Conv2d(1x1, bias=False)+BatchNorm2d folded,
# kept in PyTorch-native [Cout, Cin] orientation (channel-major kernel needs no .T).
# --------------------------------------------------------------------------------------
def _fold_conv_bn(key, cin, cout):
    kw, kg, kb = jax.random.split(key, 3)
    w = jax.random.normal(kw, (cout, cin), jnp.float32) / jnp.sqrt(jnp.float32(cin))
    gamma = 1.0 + 0.1 * jax.random.normal(kg, (cout,), jnp.float32)
    beta = 0.1 * jax.random.normal(kb, (cout,), jnp.float32)
    running_mean = jnp.zeros((cout,), jnp.float32)
    running_var = jnp.ones((cout,), jnp.float32)
    eps = 1e-3
    scale = gamma / jnp.sqrt(running_var + eps)
    w_fold = w * scale[:, None]                              # [Cout, Cin]
    b_fold = beta - running_mean * scale
    return w_fold.astype(jnp.bfloat16), b_fold.reshape(cout, 1).astype(jnp.float32)


def make_cswf(in_channel, out_channel):
    hidden = in_channel // 2
    keys = jax.random.split(jax.random.PRNGKey(0), 6)
    p = {}
    p["w1a"], p["b1a"] = _fold_conv_bn(keys[0], in_channel, hidden)    # conv_1[0] silu
    p["w1b"], p["b1b"] = _fold_conv_bn(keys[1], hidden, in_channel)    # conv_1[1] silu
    p["w2a"], p["b2a"] = _fold_conv_bn(keys[2], in_channel, hidden)    # conv_2[0] silu
    p["w2b"], p["b2b"] = _fold_conv_bn(keys[3], hidden, in_channel)    # conv_2[1] sigmoid
    p["w3a"], p["b3a"] = _fold_conv_bn(keys[4], in_channel, hidden)    # conv[0]  silu
    p["w3b"], p["b3b"] = _fold_conv_bn(keys[5], hidden, out_channel)   # conv[1]  silu
    return p


# --------------------------------------------------------------------------------------
# Pure-JAX reference (same bf16 weights / bf16 MXU inputs, f32 accumulate).
# --------------------------------------------------------------------------------------
def cswf_reference(params, r_nchw, c_nchw):
    B, C, H, W = r_nchw.shape
    r = r_nchw.reshape(B, C, H * W).astype(jnp.float32)
    c = c_nchw.reshape(B, C, H * W).astype(jnp.float32)

    def mm(w, x, b):
        acc = jnp.einsum('oc,bct->bot', w, x.astype(jnp.bfloat16),
                         preferred_element_type=jnp.float32)
        return acc + b[None]

    x = r + c
    h = _silu(mm(params["w1a"], x, params["b1a"]))
    h = _silu(mm(params["w1b"], h, params["b1b"]))
    h = _silu(mm(params["w2a"], h, params["b2a"]))
    m = _sigmoid(mm(params["w2b"], h, params["b2b"]))
    fused = c * m + r * (1.0 - m)
    h = _silu(mm(params["w3a"], fused, params["b3a"]))
    o = _silu(mm(params["w3b"], h, params["b3b"]))
    Cout = params["w3b"].shape[0]
    return o.reshape(B, Cout, H, W)


# --------------------------------------------------------------------------------------
if __name__ == "__main__":
    # Lane-dense small configuration: in_channel = out_channel = 128, 2x16x16 spatial.
    in_channel, out_channel = 128, 128
    B, H, W = 2, 16, 16

    params = make_cswf(in_channel, out_channel)

    k1, k2 = jax.random.split(jax.random.PRNGKey(0))
    # Module boundary accepts bf16 feature maps (halves HBM input traffic).
    r_feat = jax.random.normal(k1, (B, in_channel, H, W), jnp.float32).astype(jnp.bfloat16)
    c_feat = jax.random.normal(k2, (B, in_channel, H, W), jnp.float32).astype(jnp.bfloat16)

    fwd = jax.jit(functools.partial(cswf_forward, params))
    out = jax.block_until_ready(fwd(r_feat, c_feat))

    assert out.shape == (B, out_channel, H, W), out.shape
    assert jnp.isfinite(out).all()

    ref = jax.block_until_ready(
        jax.jit(functools.partial(cswf_reference, params))(r_feat, c_feat))
    assert jnp.allclose(out, ref, rtol=2e-2, atol=2e-2), float(
        jnp.max(jnp.abs(out - ref)))

    # TODO(synk): BatchNorm is folded in eval-mode (running stats); PyTorch
    # train-mode batch statistics are not reproduced.
    print("KERNEL_OK")
</pallas_src>

<mosaic_0001>
module attributes {stable_mosaic.version = 11 : i64} {
  func.func @_cswf_kernel(%arg0: i32, %arg1: i32, %arg2: memref<1x128x128xbf16, #tpu.memory_space<vmem>>, %arg3: memref<1x128x128xbf16, #tpu.memory_space<vmem>>, %arg4: memref<64x128xbf16, #tpu.memory_space<vmem>>, %arg5: memref<64x1xf32, #tpu.memory_space<vmem>>, %arg6: memref<128x64xbf16, #tpu.memory_space<vmem>>, %arg7: memref<128x1xf32, #tpu.memory_space<vmem>>, %arg8: memref<64x128xbf16, #tpu.memory_space<vmem>>, %arg9: memref<64x1xf32, #tpu.memory_space<vmem>>, %arg10: memref<128x64xbf16, #tpu.memory_space<vmem>>, %arg11: memref<128x1xf32, #tpu.memory_space<vmem>>, %arg12: memref<64x128xbf16, #tpu.memory_space<vmem>>, %arg13: memref<64x1xf32, #tpu.memory_space<vmem>>, %arg14: memref<128x64xbf16, #tpu.memory_space<vmem>>, %arg15: memref<128x1xf32, #tpu.memory_space<vmem>>, %arg16: memref<1x128x128xf32, #tpu.memory_space<vmem>>) attributes {dimension_semantics = [#tpu.dimension_semantics<parallel>, #tpu.dimension_semantics<parallel>], iteration_bounds = array<i64: 2, 2>, scalar_prefetch = 0 : i64, scratch_operands = 0 : i64, tpu.core_type = #tpu.core_type<tc>, window_params = [{transform_indices = @transform_0, window_bounds = array<i64: 1, 128, 128>}, {transform_indices = @transform_1, window_bounds = array<i64: 1, 128, 128>}, {pipeline_mode = #tpu.pipeline_mode<synchronous>, transform_indices = @transform_2, window_bounds = array<i64: 64, 128>}, {pipeline_mode = #tpu.pipeline_mode<synchronous>, transform_indices = @transform_3, window_bounds = array<i64: 64, 1>}, {pipeline_mode = #tpu.pipeline_mode<synchronous>, transform_indices = @transform_4, window_bounds = array<i64: 128, 64>}, {pipeline_mode = #tpu.pipeline_mode<synchronous>, transform_indices = @transform_5, window_bounds = array<i64: 128, 1>}, {pipeline_mode = #tpu.pipeline_mode<synchronous>, transform_indices = @transform_6, window_bounds = array<i64: 64, 128>}, {pipeline_mode = #tpu.pipeline_mode<synchronous>, transform_indices = @transform_7, window_bounds = array<i64: 64, 1>}, {pipeline_mode = #tpu.pipeline_mode<synchronous>, transform_indices = @transform_8, window_bounds = array<i64: 128, 64>}, {pipeline_mode = #tpu.pipeline_mode<synchronous>, transform_indices = @transform_9, window_bounds = array<i64: 128, 1>}, {pipeline_mode = #tpu.pipeline_mode<synchronous>, transform_indices = @transform_10, window_bounds = array<i64: 64, 128>}, {pipeline_mode = #tpu.pipeline_mode<synchronous>, transform_indices = @transform_11, window_bounds = array<i64: 64, 1>}, {pipeline_mode = #tpu.pipeline_mode<synchronous>, transform_indices = @transform_12, window_bounds = array<i64: 128, 64>}, {pipeline_mode = #tpu.pipeline_mode<synchronous>, transform_indices = @transform_13, window_bounds = array<i64: 128, 1>}, {transform_indices = @transform_14, window_bounds = array<i64: 1, 128, 128>}]} {
    %c0 = arith.constant 0 : index
    %c0_0 = arith.constant 0 : index
    %c0_1 = arith.constant 0 : index
    %0 = vector.load %arg2[%c0, %c0_0, %c0_1] : memref<1x128x128xbf16, #tpu.memory_space<vmem>>, vector<1x128x128xbf16>
    %1 = vector.shape_cast %0 : vector<1x128x128xbf16> to vector<128x128xbf16>
    %2 = arith.extf %1 : vector<128x128xbf16> to vector<128x128xf32>
    %c0_2 = arith.constant 0 : index
    %c0_3 = arith.constant 0 : index
    %c0_4 = arith.constant 0 : index
    %3 = vector.load %arg3[%c0_2, %c0_3, %c0_4] : memref<1x128x128xbf16, #tpu.memory_space<vmem>>, vector<1x128x128xbf16>
    %4 = vector.shape_cast %3 : vector<1x128x128xbf16> to vector<128x128xbf16>
    %5 = arith.extf %4 : vector<128x128xbf16> to vector<128x128xf32>
    %6 = arith.addf %2, %5 : vector<128x128xf32>
    %7 = arith.truncf %6 : vector<128x128xf32> to vector<128x128xbf16>
    %c0_5 = arith.constant 0 : index
    %c0_6 = arith.constant 0 : index
    %8 = vector.load %arg4[%c0_5, %c0_6] : memref<64x128xbf16, #tpu.memory_space<vmem>>, vector<64x128xbf16>
    %cst = arith.constant dense<0.000000e+00> : vector<64x128xf32>
    %9 = tpu.matmul %8, %7, %cst {dimension_numbers = #tpu.dot_dimension_numbers<[1], [0], [0], [1], [0, 0, 1, 1], [], []>} : vector<64x128xbf16>, vector<128x128xbf16>, vector<64x128xf32> -> vector<64x128xf32>
    %c0_7 = arith.constant 0 : index
    %c0_8 = arith.constant 0 : index
    %10 = vector.load %arg5[%c0_7, %c0_8] : memref<64x1xf32, #tpu.memory_space<vmem>>, vector<64x1xf32>
    %11 = vector.broadcast %10 : vector<64x1xf32> to vector<64x128xf32>
    %12 = arith.addf %9, %11 : vector<64x128xf32>
    %cst_9 = arith.constant 5.000000e-01 : f32
    %13 = vector.broadcast %cst_9 : f32 to vector<64x128xf32>
    %14 = arith.mulf %13, %12 : vector<64x128xf32>
    %15 = math.tanh %14 : vector<64x128xf32>
    %cst_10 = arith.constant 1.000000e+00 : f32
    %16 = vector.broadcast %cst_10 : f32 to vector<64x128xf32>
    %17 = arith.addf %15, %16 : vector<64x128xf32>
    %cst_11 = arith.constant 5.000000e-01 : f32
    %18 = vector.broadcast %cst_11 : f32 to vector<64x128xf32>
    %19 = arith.mulf %18, %17 : vector<64x128xf32>
    %20 = arith.mulf %12, %19 : vector<64x128xf32>
    %21 = arith.truncf %20 : vector<64x128xf32> to vector<64x128xbf16>
    %c0_12 = arith.constant 0 : index
    %c0_13 = arith.constant 0 : index
    %22 = vector.load %arg6[%c0_12, %c0_13] : memref<128x64xbf16, #tpu.memory_space<vmem>>, vector<128x64xbf16>
    %cst_14 = arith.constant dense<0.000000e+00> : vector<128x128xf32>
    %23 = tpu.matmul %22, %21, %cst_14 {dimension_numbers = #tpu.dot_dimension_numbers<[1], [0], [0], [1], [0, 0, 1, 1], [], []>} : vector<128x64xbf16>, vector<64x128xbf16>, vector<128x128xf32> -> vector<128x128xf32>
    %c0_15 = arith.constant 0 : index
    %c0_16 = arith.constant 0 : index
    %24 = vector.load %arg7[%c0_15, %c0_16] : memref<128x1xf32, #tpu.memory_space<vmem>>, vector<128x1xf32>
    %25 = vector.broadcast %24 : vector<128x1xf32> to vector<128x128xf32>
    %26 = arith.addf %23, %25 : vector<128x128xf32>
    %cst_17 = arith.constant 5.000000e-01 : f32
    %27 = vector.broadcast %cst_17 : f32 to vector<128x128xf32>
    %28 = arith.mulf %27, %26 : vector<128x128xf32>
    %29 = math.tanh %28 : vector<128x128xf32>
    %cst_18 = arith.constant 1.000000e+00 : f32
    %30 = vector.broadcast %cst_18 : f32 to vector<128x128xf32>
    %31 = arith.addf %29, %30 : vector<128x128xf32>
    %cst_19 = arith.constant 5.000000e-01 : f32
    %32 = vector.broadcast %cst_19 : f32 to vector<128x128xf32>
    %33 = arith.mulf %32, %31 : vector<128x128xf32>
    %34 = arith.mulf %26, %33 : vector<128x128xf32>
    %35 = arith.truncf %34 : vector<128x128xf32> to vector<128x128xbf16>
    %c0_20 = arith.constant 0 : index
    %c0_21 = arith.constant 0 : index
    %36 = vector.load %arg8[%c0_20, %c0_21] : memref<64x128xbf16, #tpu.memory_space<vmem>>, vector<64x128xbf16>
    %cst_22 = arith.constant dense<0.000000e+00> : vector<64x128xf32>
    %37 = tpu.matmul %36, %35, %cst_22 {dimension_numbers = #tpu.dot_dimension_numbers<[1], [0], [0], [1], [0, 0, 1, 1], [], []>} : vector<64x128xbf16>, vector<128x128xbf16>, vector<64x128xf32> -> vector<64x128xf32>
    %c0_23 = arith.constant 0 : index
    %c0_24 = arith.constant 0 : index
    %38 = vector.load %arg9[%c0_23, %c0_24] : memref<64x1xf32, #tpu.memory_space<vmem>>, vector<64x1xf32>
    %39 = vector.broadcast %38 : vector<64x1xf32> to vector<64x128xf32>
    %40 = arith.addf %37, %39 : vector<64x128xf32>
    %cst_25 = arith.constant 5.000000e-01 : f32
    %41 = vector.broadcast %cst_25 : f32 to vector<64x128xf32>
    %42 = arith.mulf %41, %40 : vector<64x128xf32>
    %43 = math.tanh %42 : vector<64x128xf32>
    %cst_26 = arith.constant 1.000000e+00 : f32
    %44 = vector.broadcast %cst_26 : f32 to vector<64x128xf32>
    %45 = arith.addf %43, %44 : vector<64x128xf32>
    %cst_27 = arith.constant 5.000000e-01 : f32
    %46 = vector.broadcast %cst_27 : f32 to vector<64x128xf32>
    %47 = arith.mulf %46, %45 : vector<64x128xf32>
    %48 = arith.mulf %40, %47 : vector<64x128xf32>
    %49 = arith.truncf %48 : vector<64x128xf32> to vector<64x128xbf16>
    %c0_28 = arith.constant 0 : index
    %c0_29 = arith.constant 0 : index
    %50 = vector.load %arg10[%c0_28, %c0_29] : memref<128x64xbf16, #tpu.memory_space<vmem>>, vector<128x64xbf16>
    %cst_30 = arith.constant dense<0.000000e+00> : vector<128x128xf32>
    %51 = tpu.matmul %50, %49, %cst_30 {dimension_numbers = #tpu.dot_dimension_numbers<[1], [0], [0], [1], [0, 0, 1, 1], [], []>} : vector<128x64xbf16>, vector<64x128xbf16>, vector<128x128xf32> -> vector<128x128xf32>
    %c0_31 = arith.constant 0 : index
    %c0_32 = arith.constant 0 : index
    %52 = vector.load %arg11[%c0_31, %c0_32] : memref<128x1xf32, #tpu.memory_space<vmem>>, vector<128x1xf32>
    %53 = vector.broadcast %52 : vector<128x1xf32> to vector<128x128xf32>
    %54 = arith.addf %51, %53 : vector<128x128xf32>
    %cst_33 = arith.constant 5.000000e-01 : f32
    %55 = vector.broadcast %cst_33 : f32 to vector<128x128xf32>
    %56 = arith.mulf %55, %54 : vector<128x128xf32>
    %57 = math.tanh %56 : vector<128x128xf32>
    %cst_34 = arith.constant 1.000000e+00 : f32
    %58 = vector.broadcast %cst_34 : f32 to vector<128x128xf32>
    %59 = arith.addf %57, %58 : vector<128x128xf32>
    %cst_35 = arith.constant 5.000000e-01 : f32
    %60 = vector.broadcast %cst_35 : f32 to vector<128x128xf32>
    %61 = arith.mulf %60, %59 : vector<128x128xf32>
    %62 = arith.subf %5, %2 : vector<128x128xf32>
    %63 = arith.mulf %61, %62 : vector<128x128xf32>
    %64 = arith.addf %2, %63 : vector<128x128xf32>
    %65 = arith.truncf %64 : vector<128x128xf32> to vector<128x128xbf16>
    %c0_36 = arith.constant 0 : index
    %c0_37 = arith.constant 0 : index
    %66 = vector.load %arg12[%c0_36, %c0_37] : memref<64x128xbf16, #tpu.memory_space<vmem>>, vector<64x128xbf16>
    %cst_38 = arith.constant dense<0.000000e+00> : vector<64x128xf32>
    %67 = tpu.matmul %66, %65, %cst_38 {dimension_numbers = #tpu.dot_dimension_numbers<[1], [0], [0], [1], [0, 0, 1, 1], [], []>} : vector<64x128xbf16>, vector<128x128xbf16>, vector<64x128xf32> -> vector<64x128xf32>
    %c0_39 = arith.constant 0 : index
    %c0_40 = arith.constant 0 : index
    %68 = vector.load %arg13[%c0_39, %c0_40] : memref<64x1xf32, #tpu.memory_space<vmem>>, vector<64x1xf32>
    %69 = vector.broadcast %68 : vector<64x1xf32> to vector<64x128xf32>
    %70 = arith.addf %67, %69 : vector<64x128xf32>
    %cst_41 = arith.constant 5.000000e-01 : f32
    %71 = vector.broadcast %cst_41 : f32 to vector<64x128xf32>
    %72 = arith.mulf %71, %70 : vector<64x128xf32>
    %73 = math.tanh %72 : vector<64x128xf32>
    %cst_42 = arith.constant 1.000000e+00 : f32
    %74 = vector.broadcast %cst_42 : f32 to vector<64x128xf32>
    %75 = arith.addf %73, %74 : vector<64x128xf32>
    %cst_43 = arith.constant 5.000000e-01 : f32
    %76 = vector.broadcast %cst_43 : f32 to vector<64x128xf32>
    %77 = arith.mulf %76, %75 : vector<64x128xf32>
    %78 = arith.mulf %70, %77 : vector<64x128xf32>
    %79 = arith.truncf %78 : vector<64x128xf32> to vector<64x128xbf16>
    %c0_44 = arith.constant 0 : index
    %c0_45 = arith.constant 0 : index
    %80 = vector.load %arg14[%c0_44, %c0_45] : memref<128x64xbf16, #tpu.memory_space<vmem>>, vector<128x64xbf16>
    %cst_46 = arith.constant dense<0.000000e+00> : vector<128x128xf32>
    %81 = tpu.matmul %80, %79, %cst_46 {dimension_numbers = #tpu.dot_dimension_numbers<[1], [0], [0], [1], [0, 0, 1, 1], [], []>} : vector<128x64xbf16>, vector<64x128xbf16>, vector<128x128xf32> -> vector<128x128xf32>
    %c0_47 = arith.constant 0 : index
    %c0_48 = arith.constant 0 : index
    %82 = vector.load %arg15[%c0_47, %c0_48] : memref<128x1xf32, #tpu.memory_space<vmem>>, vector<128x1xf32>
    %83 = vector.broadcast %82 : vector<128x1xf32> to vector<128x128xf32>
    %84 = arith.addf %81, %83 : vector<128x128xf32>
    %cst_49 = arith.constant 5.000000e-01 : f32
    %85 = vector.broadcast %cst_49 : f32 to vector<128x128xf32>
    %86 = arith.mulf %85, %84 : vector<128x128xf32>
    %87 = math.tanh %86 : vector<128x128xf32>
    %cst_50 = arith.constant 1.000000e+00 : f32
    %88 = vector.broadcast %cst_50 : f32 to vector<128x128xf32>
    %89 = arith.addf %87, %88 : vector<128x128xf32>
    %cst_51 = arith.constant 5.000000e-01 : f32
    %90 = vector.broadcast %cst_51 : f32 to vector<128x128xf32>
    %91 = arith.mulf %90, %89 : vector<128x128xf32>
    %92 = arith.mulf %84, %91 : vector<128x128xf32>
    %c0_52 = arith.constant 0 : index
    %c0_53 = arith.constant 0 : index
    %c0_54 = arith.constant 0 : index
    %93 = vector.load %arg16[%c0_52, %c0_53, %c0_54] : memref<1x128x128xf32, #tpu.memory_space<vmem>>, vector<1x128x128xf32>
    %94 = vector.shape_cast %93 : vector<1x128x128xf32> to vector<128x128xf32>
    %95 = vector.shape_cast %92 : vector<128x128xf32> to vector<1x128x128xf32>
    tpu.vector_store %arg16[%c0_52, %c0_53, %c0_54], %95 {strides = array<i32>} : memref<1x128x128xf32, #tpu.memory_space<vmem>>, vector<1x128x128xf32>,
    return
  }
  func.func @transform_0(%arg0: i32, %arg1: i32) -> (i32, i32, i32) {
    %c0_i32 = arith.constant 0 : i32
    %c0_i32_0 = arith.constant 0 : i32
    return %arg0, %c0_i32, %arg1 : i32, i32, i32
  }
  func.func @transform_1(%arg0: i32, %arg1: i32) -> (i32, i32, i32) {
    %c0_i32 = arith.constant 0 : i32
    %c0_i32_0 = arith.constant 0 : i32
    return %arg0, %c0_i32, %arg1 : i32, i32, i32
  }
  func.func @transform_2(%arg0: i32, %arg1: i32) -> (i32, i32) {
    %c0_i32 = arith.constant 0 : i32
    %c0_i32_0 = arith.constant 0 : i32
    %c0_i32_1 = arith.constant 0 : i32
    return %c0_i32, %c0_i32_0 : i32, i32
  }
  func.func @transform_3(%arg0: i32, %arg1: i32) -> (i32, i32) {
    %c0_i32 = arith.constant 0 : i32
    %c0_i32_0 = arith.constant 0 : i32
    %c0_i32_1 = arith.constant 0 : i32
    return %c0_i32, %c0_i32_0 : i32, i32
  }
  func.func @transform_4(%arg0: i32, %arg1: i32) -> (i32, i32) {
    %c0_i32 = arith.constant 0 : i32
    %c0_i32_0 = arith.constant 0 : i32
    %c0_i32_1 = arith.constant 0 : i32
    return %c0_i32, %c0_i32_0 : i32, i32
  }
  func.func @transform_5(%arg0: i32, %arg1: i32) -> (i32, i32) {
    %c0_i32 = arith.constant 0 : i32
    %c0_i32_0 = arith.constant 0 : i32
    %c0_i32_1 = arith.constant 0 : i32
    return %c0_i32, %c0_i32_0 : i32, i32
  }
  func.func @transform_6(%arg0: i32, %arg1: i32) -> (i32, i32) {
    %c0_i32 = arith.constant 0 : i32
    %c0_i32_0 = arith.constant 0 : i32
    %c0_i32_1 = arith.constant 0 : i32
    return %c0_i32, %c0_i32_0 : i32, i32
  }
  func.func @transform_7(%arg0: i32, %arg1: i32) -> (i32, i32) {
    %c0_i32 = arith.constant 0 : i32
    %c0_i32_0 = arith.constant 0 : i32
    %c0_i32_1 = arith.constant 0 : i32
    return %c0_i32, %c0_i32_0 : i32, i32
  }
  func.func @transform_8(%arg0: i32, %arg1: i32) -> (i32, i32) {
    %c0_i32 = arith.constant 0 : i32
    %c0_i32_0 = arith.constant 0 : i32
    %c0_i32_1 = arith.constant 0 : i32
    return %c0_i32, %c0_i32_0 : i32, i32
  }
  func.func @transform_9(%arg0: i32, %arg1: i32) -> (i32, i32) {
    %c0_i32 = arith.constant 0 : i32
    %c0_i32_0 = arith.constant 0 : i32
    %c0_i32_1 = arith.constant 0 : i32
    return %c0_i32, %c0_i32_0 : i32, i32
  }
  func.func @transform_10(%arg0: i32, %arg1: i32) -> (i32, i32) {
    %c0_i32 = arith.constant 0 : i32
    %c0_i32_0 = arith.constant 0 : i32
    %c0_i32_1 = arith.constant 0 : i32
    return %c0_i32, %c0_i32_0 : i32, i32
  }
  func.func @transform_11(%arg0: i32, %arg1: i32) -> (i32, i32) {
    %c0_i32 = arith.constant 0 : i32
    %c0_i32_0 = arith.constant 0 : i32
    %c0_i32_1 = arith.constant 0 : i32
    return %c0_i32, %c0_i32_0 : i32, i32
  }
  func.func @transform_12(%arg0: i32, %arg1: i32) -> (i32, i32) {
    %c0_i32 = arith.constant 0 : i32
    %c0_i32_0 = arith.constant 0 : i32
    %c0_i32_1 = arith.constant 0 : i32
    return %c0_i32, %c0_i32_0 : i32, i32
  }
  func.func @transform_13(%arg0: i32, %arg1: i32) -> (i32, i32) {
    %c0_i32 = arith.constant 0 : i32
    %c0_i32_0 = arith.constant 0 : i32
    %c0_i32_1 = arith.constant 0 : i32
    return %c0_i32, %c0_i32_0 : i32, i32
  }
  func.func @transform_14(%arg0: i32, %arg1: i32) -> (i32, i32, i32) {
    %c0_i32 = arith.constant 0 : i32
    %c0_i32_0 = arith.constant 0 : i32
    return %arg0, %c0_i32, %arg1 : i32, i32, i32
  }
}

</mosaic_0001>

<llo_original>
// kernel: cswf_forward.1
$region0: #{cswf_forward.1}
  #allocation0 [shape = 'u32[]', space=smem, size = 0x4, offset = 0x4, fixed_abs, tag = 'smem constant byte address 0x4 - core index']
  #allocation1 [shape = 'u32[144,128]{1,0:T(1,128)}', space=vmem, size = 0x12000, scoped, tag = 'internal scratch']
  %s0 = inlined_call_operand.vmem [shape: bf16[2,128,256], index: 0, kind: input, shape index: {}]
  %s1 = inlined_call_operand.vmem [shape: bf16[2,128,256], index: 1, kind: input, shape index: {}]
  %s2 = inlined_call_operand.hbm [shape: bf16[64,128], index: 2, kind: input, shape index: {}]
  %s3 = inlined_call_operand.vmem [shape: f32[64,1], index: 3, kind: input, shape index: {}]
  %s4 = inlined_call_operand.vmem [shape: bf16[128,64], index: 4, kind: input, shape index: {}]
  %s5 = inlined_call_operand.vmem [shape: f32[128,1], index: 5, kind: input, shape index: {}]
  %s6 = inlined_call_operand.hbm [shape: bf16[64,128], index: 6, kind: input, shape index: {}]
  %s7 = inlined_call_operand.vmem [shape: f32[64,1], index: 7, kind: input, shape index: {}]
  %s8 = inlined_call_operand.vmem [shape: bf16[128,64], index: 8, kind: input, shape index: {}]
  %s9 = inlined_call_operand.vmem [shape: f32[128,1], index: 9, kind: input, shape index: {}]
  %s10 = inlined_call_operand.hbm [shape: bf16[64,128], index: 10, kind: input, shape index: {}]
  %s11 = inlined_call_operand.vmem [shape: f32[64,1], index: 11, kind: input, shape index: {}]
  %s12 = inlined_call_operand.vmem [shape: bf16[128,64], index: 12, kind: input, shape index: {}]
  %s13 = inlined_call_operand.vmem [shape: f32[128,1], index: 13, kind: input, shape index: {}]
  %s14 = inlined_call_operand.vmem [shape: f32[2,128,256], index: 14, kind: output, shape index: {}]
  %s15 = sld [smem:[#allocation0]]
  $region217: #{cswf_forward.1} parent=0
    _
  %s17 = ssub.s32 1, %s15
  %s18 = scalar_select 0, %s17, %s15
  $region1: #{cswf_forward.1} parent=0
    #allocation2 [shape = 'u8[65536]{0}', space=vmem, size = 0x10000, scoped, tag = 'input window, operand 0']
    #allocation3 [shape = 'u8[65536]{0}', space=vmem, size = 0x10000, scoped, tag = 'input window, operand 1']
    #allocation4 [shape = 'u8[16384]{0}', space=vmem, size = 0x4000, scoped, tag = 'input window, operand 2, single buffered']
    #allocation5 [shape = 's32[2]{0}', space=sflag, size = 0x8, scoped, tag = 'scoped memory for cswf_forward.1']
    #allocation6 [shape = 'u8[16384]{0}', space=vmem, size = 0x4000, scoped, tag = 'input window, operand 6, single buffered']
    #allocation7 [shape = 's32[1]{0}', space=sflag, size = 0x4, scoped, tag = 'scoped memory for cswf_forward.1']
    #allocation8 [shape = 'u8[16384]{0}', space=vmem, size = 0x4000, scoped, tag = 'input window, operand 10, single buffered']
    #allocation9 [shape = 'u8[131072]{0}', space=vmem, size = 0x20000, scoped, tag = 'output window, operand 0']
    %19 = vsyncpa [#allocation5], 0
    %20 = vsyncpa [#allocation7], 0
    loop: start=0, step=1, limit=6
    $region2: #{cswf_forward.1} parent=1 // loop_pre_header
      _
    $region3: #{cswf_forward.1} parent=1 // loop_header
      %s22 = sphi 0, %s26
      %p23 = scmp.ge.s32.totalorder %s22, 6
      %s29 = sphi 0, %s41
      %s30 = sphi 0, %s37
      %s31 = sphi 0, %s29
      %s32 = sphi 0, %s30
      %s33 = sphi 0, %s31
      %s34 = sphi 0, %s32
      %s46 = sphi 0, %s48
      %s49 = sphi 0, %s46
      %s50 = sphi 0, %s49
      %s66 = sphi 0, %s50
      %s74 = sphi 0, %s76
      %s77 = sphi 0, %s74
      %s78 = sphi 0, %s77
      %s94 = sphi 0, %s78
      %s98 = sphi 0, %s98
      %s100 = sphi 0, %s98
      %s101 = sphi 0, %s100
      %s115 = sphi 0, %s101
      %s119 = sphi 0, %s119
      %s121 = sphi 0, %s119
      %s122 = sphi 0, %s121
      %s136 = sphi 0, %s122
      %s140 = sphi 0, %s140
      %s142 = sphi 0, %s140
      %s143 = sphi 0, %s142
      %s157 = sphi 0, %s143
      %s161 = sphi 0, %s161
      %s163 = sphi 0, %s161
      %s164 = sphi 0, %s163
      %s178 = sphi 0, %s164
      %s182 = sphi 0, %s182
      %s184 = sphi 0, %s182
      %s185 = sphi 0, %s184
      %s199 = sphi 0, %s185
      %s203 = sphi 0, %s203
      %s205 = sphi 0, %s203
      %s206 = sphi 0, %s205
      %s220 = sphi 0, %s206
      %s224 = sphi 0, %s224
      %s226 = sphi 0, %s224
      %s227 = sphi 0, %s226
      %s241 = sphi 0, %s227
      %s245 = sphi 0, %s245
      %s247 = sphi 0, %s245
      %s248 = sphi 0, %s247
      %s262 = sphi 0, %s248
      %s266 = sphi 0, %s266
      %s268 = sphi 0, %s266
      %s269 = sphi 0, %s268
      %s283 = sphi 0, %s269
      %s287 = sphi 0, %s287
      %s289 = sphi 0, %s287
      %s290 = sphi 0, %s289
      %s304 = sphi 0, %s290
      %s308 = sphi 0, %s308
      %s310 = sphi 0, %s308
      %s311 = sphi 0, %s310
      %s325 = sphi 0, %s311
      %s329 = sphi 0, %s329
      %s331 = sphi 0, %s329
      %s332 = sphi 0, %s331
      %s346 = sphi 0, %s332
      %s354 = sphi 0, %s356
      %s357 = sphi 0, %s354
      %s358 = sphi 0, %s357
      %s374 = sphi 0, %s358
    $region4: #{cswf_forward.1} parent=1 // loop_header_branch
      %25 = sbr.rel (%p23) target = $region8
    $region5: #{cswf_forward.1} parent=1 // loop_body
      %s27 = ssub.s32 %s22, 1
      %s28 = ssub.s32 %s22, 2
      %s35 = sadd.s32 1, %s30
      %p36 = scmp.ge.s32.totalorder %s35, 2
      %s37 = scalar_select %p36, 0, %s35
      %s38 = sadd.s32 1, %s29
      %s39 = scalar_select %p36, %s38, %s29
      %p40 = scmp.ge.s32.totalorder %s39, 2
      %s41 = scalar_select %p40, 0, %s39
      %s42 = ssub.s32 %s29, %s41
      %s43 = ssub.s32 %s30, %s37
      %s44 = sor.u32 %s42, %s43
      %p45 = scmp.eq.s32.totalorder %s44, 0
      %s47 = sadd.s32 %s46, 1
      %s48 = scalar_select %p45, %s46, %s47
      %p51 = pneg %p45
      %p52 = scmp.eq.s32.totalorder %s22, 3
      %p53 = por %p51, %p52
      %p54 = scmp.ne.s32.totalorder %s46, %s49
      %p55 = scmp.eq.s32.totalorder %s22, 0
      %p56 = por %p54, %p55
      %p57 = scmp.ne.s32.totalorder %s46, %s49
      %p58 = scmp.eq.s32.totalorder %s27, 3
      %p59 = por %p57, %p58
      %p60 = scmp.ne.s32.totalorder %s49, %s50
      %p61 = scmp.eq.s32.totalorder %s27, 0
      %p62 = por %p60, %p61
      %p63 = scmp.ne.s32.totalorder %s49, %s50
      %p64 = scmp.eq.s32.totalorder %s28, 3
      %p65 = por %p63, %p64
      %p67 = scmp.ne.s32.totalorder %s50, %s66
      %p68 = scmp.eq.s32.totalorder %s28, 0
      %p69 = por %p67, %p68
      %s70 = ssub.s32 %s29, %s41
      %s71 = ssub.s32 %s30, %s37
      %s72 = sor.u32 %s70, %s71
      %p73 = scmp.eq.s32.totalorder %s72, 0
      %s75 = sadd.s32 %s74, 1
      %s76 = scalar_select %p73, %s74, %s75
      %p79 = pneg %p73
      %p80 = scmp.eq.s32.totalorder %s22, 3
      %p81 = por %p79, %p80
      %p82 = scmp.ne.s32.totalorder %s74, %s77
      %p83 = scmp.eq.s32.totalorder %s22, 0
      %p84 = por %p82, %p83
      %p85 = scmp.ne.s32.totalorder %s74, %s77
      %p86 = scmp.eq.s32.totalorder %s27, 3
      %p87 = por %p85, %p86
      %p88 = scmp.ne.s32.totalorder %s77, %s78
      %p89 = scmp.eq.s32.totalorder %s27, 0
      %p90 = por %p88, %p89
      %p91 = scmp.ne.s32.totalorder %s77, %s78
      %p92 = scmp.eq.s32.totalorder %s28, 3
      %p93 = por %p91, %p92
      %p95 = scmp.ne.s32.totalorder %s78, %s94
      %p96 = scmp.eq.s32.totalorder %s28, 0
      %p97 = por %p95, %p96
      %s99 = sadd.s32 %s98, 1
      %p102 = scmp.eq.s32.totalorder %s22, 3
      %p103 = scmp.ne.s32.totalorder %s98, %s100
      %p104 = scmp.eq.s32.totalorder %s22, 0
      %p105 = por %p103, %p104
      %p106 = scmp.ne.s32.totalorder %s98, %s100
      %p107 = scmp.eq.s32.totalorder %s27, 3
      %p108 = por %p106, %p107
      %p109 = scmp.ne.s32.totalorder %s100, %s101
      %p110 = scmp.eq.s32.totalorder %s27, 0
      %p111 = por %p109, %p110
      %p112 = scmp.ne.s32.totalorder %s100, %s101
      %p113 = scmp.eq.s32.totalorder %s28, 3
      %p114 = por %p112, %p113
      %p116 = scmp.ne.s32.totalorder %s101, %s115
      %p117 = scmp.eq.s32.totalorder %s28, 0
      %p118 = por %p116, %p117
      %s120 = sadd.s32 %s119, 1
      %p123 = scmp.eq.s32.totalorder %s22, 3
      %p124 = scmp.ne.s32.totalorder %s119, %s121
      %p125 = scmp.eq.s32.totalorder %s22, 0
      %p126 = por %p124, %p125
      %p127 = scmp.ne.s32.totalorder %s119, %s121
      %p128 = scmp.eq.s32.totalorder %s27, 3
      %p129 = por %p127, %p128
      %p130 = scmp.ne.s32.totalorder %s121, %s122
      %p131 = scmp.eq.s32.totalorder %s27, 0
      %p132 = por %p130, %p131
      %p133 = scmp.ne.s32.totalorder %s121, %s122
      %p134 = scmp.eq.s32.totalorder %s28, 3
      %p135 = por %p133, %p134
      %p137 = scmp.ne.s32.totalorder %s122, %s136
      %p138 = scmp.eq.s32.totalorder %s28, 0
      %p139 = por %p137, %p138
      %s141 = sadd.s32 %s140, 1
      %p144 = scmp.eq.s32.totalorder %s22, 3
      %p145 = scmp.ne.s32.totalorder %s140, %s142
      %p146 = scmp.eq.s32.totalorder %s22, 0
      %p147 = por %p145, %p146
      %p148 = scmp.ne.s32.totalorder %s140, %s142
      %p149 = scmp.eq.s32.totalorder %s27, 3
      %p150 = por %p148, %p149
      %p151 = scmp.ne.s32.totalorder %s142, %s143
      %p152 = scmp.eq.s32.totalorder %s27, 0
      %p153 = por %p151, %p152
      %p154 = scmp.ne.s32.totalorder %s142, %s143
      %p155 = scmp.eq.s32.totalorder %s28, 3
      %p156 = por %p154, %p155
      %p158 = scmp.ne.s32.totalorder %s143, %s157
      %p159 = scmp.eq.s32.totalorder %s28, 0
      %p160 = por %p158, %p159
      %s162 = sadd.s32 %s161, 1
      %p165 = scmp.eq.s32.totalorder %s22, 3
      %p166 = scmp.ne.s32.totalorder %s161, %s163
      %p167 = scmp.eq.s32.totalorder %s22, 0
      %p168 = por %p166, %p167
      %p169 = scmp.ne.s32.totalorder %s161, %s163
      %p170 = scmp.eq.s32.totalorder %s27, 3
      %p171 = por %p169, %p170
      %p172 = scmp.ne.s32.totalorder %s163, %s164
      %p173 = scmp.eq.s32.totalorder %s27, 0
      %p174 = por %p172, %p173
      %p175 = scmp.ne.s32.totalorder %s163, %s164
      %p176 = scmp.eq.s32.totalorder %s28, 3
      %p177 = por %p175, %p176
      %p179 = scmp.ne.s32.totalorder %s164, %s178
      %p180 = scmp.eq.s32.totalorder %s28, 0
      %p181 = por %p179, %p180
      %s183 = sadd.s32 %s182, 1
      %p186 = scmp.eq.s32.totalorder %s22, 3
      %p187 = scmp.ne.s32.totalorder %s182, %s184
      %p188 = scmp.eq.s32.totalorder %s22, 0
      %p189 = por %p187, %p188
      %p190 = scmp.ne.s32.totalorder %s182, %s184
      %p191 = scmp.eq.s32.totalorder %s27, 3
      %p192 = por %p190, %p191
      %p193 = scmp.ne.s32.totalorder %s184, %s185
      %p194 = scmp.eq.s32.totalorder %s27, 0
      %p195 = por %p193, %p194
      %p196 = scmp.ne.s32.totalorder %s184, %s185
      %p197 = scmp.eq.s32.totalorder %s28, 3
      %p198 = por %p196, %p197
      %p200 = scmp.ne.s32.totalorder %s185, %s199
      %p201 = scmp.eq.s32.totalorder %s28, 0
      %p202 = por %p200, %p201
      %s204 = sadd.s32 %s203, 1
      %p207 = scmp.eq.s32.totalorder %s22, 3
      %p208 = scmp.ne.s32.totalorder %s203, %s205
      %p209 = scmp.eq.s32.totalorder %s22, 0
      %p210 = por %p208, %p209
      %p211 = scmp.ne.s32.totalorder %s203, %s205
      %p212 = scmp.eq.s32.totalorder %s27, 3
      %p213 = por %p211, %p212
      %p214 = scmp.ne.s32.totalorder %s205, %s206
      %p215 = scmp.eq.s32.totalorder %s27, 0
      %p216 = por %p214, %p215
      %p217 = scmp.ne.s32.totalorder %s205, %s206
      %p218 = scmp.eq.s32.totalorder %s28, 3
      %p219 = por %p217, %p218
      %p221 = scmp.ne.s32.totalorder %s206, %s220
      %p222 = scmp.eq.s32.totalorder %s28, 0
      %p223 = por %p221, %p222
      %s225 = sadd.s32 %s224, 1
      %p228 = scmp.eq.s32.totalorder %s22, 3
      %p229 = scmp.ne.s32.totalorder %s224, %s226
      %p230 = scmp.eq.s32.totalorder %s22, 0
      %p231 = por %p229, %p230
      %p232 = scmp.ne.s32.totalorder %s224, %s226
      %p233 = scmp.eq.s32.totalorder %s27, 3
      %p234 = por %p232, %p233
      %p235 = scmp.ne.s32.totalorder %s226, %s227
      %p236 = scmp.eq.s32.totalorder %s27, 0
      %p237 = por %p235, %p236
      %p238 = scmp.ne.s32.totalorder %s226, %s227
      %p239 = scmp.eq.s32.totalorder %s28, 3
      %p240 = por %p238, %p239
      %p242 = scmp.ne.s32.totalorder %s227, %s241
      %p243 = scmp.eq.s32.totalorder %s28, 0
      %p244 = por %p242, %p243
      %s246 = sadd.s32 %s245, 1
      %p249 = scmp.eq.s32.totalorder %s22, 3
      %p250 = scmp.ne.s32.totalorder %s245, %s247
      %p251 = scmp.eq.s32.totalorder %s22, 0
      %p252 = por %p250, %p251
      %p253 = scmp.ne.s32.totalorder %s245, %s247
      %p254 = scmp.eq.s32.totalorder %s27, 3
      %p255 = por %p253, %p254
      %p256 = scmp.ne.s32.totalorder %s247, %s248
      %p257 = scmp.eq.s32.totalorder %s27, 0
      %p258 = por %p256, %p257
      %p259 = scmp.ne.s32.totalorder %s247, %s248
      %p260 = scmp.eq.s32.totalorder %s28, 3
      %p261 = por %p259, %p260
      %p263 = scmp.ne.s32.totalorder %s248, %s262
      %p264 = scmp.eq.s32.totalorder %s28, 0
      %p265 = por %p263, %p264
      %s267 = sadd.s32 %s266, 1
      %p270 = scmp.eq.s32.totalorder %s22, 3
      %p271 = scmp.ne.s32.totalorder %s266, %s268
      %p272 = scmp.eq.s32.totalorder %s22, 0
      %p273 = por %p271, %p272
      %p274 = scmp.ne.s32.totalorder %s266, %s268
      %p275 = scmp.eq.s32.totalorder %s27, 3
      %p276 = por %p274, %p275
      %p277 = scmp.ne.s32.totalorder %s268, %s269
      %p278 = scmp.eq.s32.totalorder %s27, 0
      %p279 = por %p277, %p278
      %p280 = scmp.ne.s32.totalorder %s268, %s269
      %p281 = scmp.eq.s32.totalorder %s28, 3
      %p282 = por %p280, %p281
      %p284 = scmp.ne.s32.totalorder %s269, %s283
      %p285 = scmp.eq.s32.totalorder %s28, 0
      %p286 = por %p284, %p285
      %s288 = sadd.s32 %s287, 1
      %p291 = scmp.eq.s32.totalorder %s22, 3
      %p292 = scmp.ne.s32.totalorder %s287, %s289
      %p293 = scmp.eq.s32.totalorder %s22, 0
      %p294 = por %p292, %p293
      %p295 = scmp.ne.s32.totalorder %s287, %s289
      %p296 = scmp.eq.s32.totalorder %s27, 3
      %p297 = por %p295, %p296
      %p298 = scmp.ne.s32.totalorder %s289, %s290
      %p299 = scmp.eq.s32.totalorder %s27, 0
      %p300 = por %p298, %p299
      %p301 = scmp.ne.s32.totalorder %s289, %s290
      %p302 = scmp.eq.s32.totalorder %s28, 3
      %p303 = por %p301, %p302
      %p305 = scmp.ne.s32.totalorder %s290, %s304
      %p306 = scmp.eq.s32.totalorder %s28, 0
      %p307 = por %p305, %p306
      %s309 = sadd.s32 %s308, 1
      %p312 = scmp.eq.s32.totalorder %s22, 3
      %p313 = scmp.ne.s32.totalorder %s308, %s310
      %p314 = scmp.eq.s32.totalorder %s22, 0
      %p315 = por %p313, %p314
      %p316 = scmp.ne.s32.totalorder %s308, %s310
      %p317 = scmp.eq.s32.totalorder %s27, 3
      %p318 = por %p316, %p317
      %p319 = scmp.ne.s32.totalorder %s310, %s311
      %p320 = scmp.eq.s32.totalorder %s27, 0
      %p321 = por %p319, %p320
      %p322 = scmp.ne.s32.totalorder %s310, %s311
      %p323 = scmp.eq.s32.totalorder %s28, 3
      %p324 = por %p322, %p323
      %p326 = scmp.ne.s32.totalorder %s311, %s325
      %p327 = scmp.eq.s32.totalorder %s28, 0
      %p328 = por %p326, %p327
      %s330 = sadd.s32 %s329, 1
      %p333 = scmp.eq.s32.totalorder %s22, 3
      %p334 = scmp.ne.s32.totalorder %s329, %s331
      %p335 = scmp.eq.s32.totalorder %s22, 0
      %p336 = por %p334, %p335
      %p337 = scmp.ne.s32.totalorder %s329, %s331
      %p338 = scmp.eq.s32.totalorder %s27, 3
      %p339 = por %p337, %p338
      %p340 = scmp.ne.s32.totalorder %s331, %s332
      %p341 = scmp.eq.s32.totalorder %s27, 0
      %p342 = por %p340, %p341
      %p343 = scmp.ne.s32.totalorder %s331, %s332
      %p344 = scmp.eq.s32.totalorder %s28, 3
      %p345 = por %p343, %p344
      %p347 = scmp.ne.s32.totalorder %s332, %s346
      %p348 = scmp.eq.s32.totalorder %s28, 0
      %p349 = por %p347, %p348
      %s350 = ssub.s32 %s29, %s41
      %s351 = ssub.s32 %s30, %s37
      %s352 = sor.u32 %s350, %s351
      %p353 = scmp.eq.s32.totalorder %s352, 0
      %s355 = sadd.s32 %s354, 1
      %s356 = scalar_select %p353, %s354, %s355
      %p359 = pneg %p353
      %p360 = scmp.eq.s32.totalorder %s22, 3
      %p361 = por %p359, %p360
      %p362 = scmp.ne.s32.totalorder %s354, %s357
      %p363 = scmp.eq.s32.totalorder %s22, 0
      %p364 = por %p362, %p363
      %p365 = scmp.ne.s32.totalorder %s354, %s357
      %p366 = scmp.eq.s32.totalorder %s27, 3
      %p367 = por %p365, %p366
      %p368 = scmp.ne.s32.totalorder %s357, %s358
      %p369 = scmp.eq.s32.totalorder %s27, 0
      %p370 = por %p368, %p369
      %p371 = scmp.ne.s32.totalorder %s357, %s358
      %p372 = scmp.eq.s32.totalorder %s28, 3
      %p373 = por %p371, %p372
      %p375 = scmp.ne.s32.totalorder %s358, %s374
      %p376 = scmp.eq.s32.totalorder %s28, 0
      %p377 = por %p375, %p376
      %p378 = scmp.le.s32.totalorder 1, %s22
      %p379 = scmp.lt.s32.totalorder %s22, 5
      %p380 = pnand %p378, %p379
      %p381 = pneg %p380
      // Predicated region
      $region9: #{cswf_forward.1} parent=5 // pred_check
        _
      $region10: #{cswf_forward.1} parent=5 // pred_check_branch
        %383 = sbr.rel (%p380) target = $region12
      $region11: #{cswf_forward.1} parent=5 // pred_region
        %s384 = ssub.s32 %s22, 1
        // Predicated region
        $region13: #{cswf_forward.1} parent=11 // pred_check
          %p385 = pneg %p111
        $region14: #{cswf_forward.1} parent=11 // pred_check_branch
          %387 = sbr.rel (%p385) target = $region16
        $region15: #{cswf_forward.1} parent=11 // pred_region
          %s389 = ssub.s32 512, 512
          %390 = vsyncadd [#allocation5], %s389
          %s391 = sshll.u32 [#allocation4], 4
          %s392 = int_to_ptr.vmem [resolvable:$true] %s391
          %397 = dma.hbm_to_vmem [thread:$0]  %s2, 512, %s392, [#allocation5], 64, 64, 4
        $region16: #{cswf_forward.1} parent=11 // pred_fallthru
          _
        // Predicated region
        $region17: #{cswf_forward.1} parent=11 // pred_check
          %p398 = pneg %p132
        $region18: #{cswf_forward.1} parent=11 // pred_check_branch
          %400 = sbr.rel (%p398) target = $region20
        $region19: #{cswf_forward.1} parent=11 // pred_region
          _
        $region20: #{cswf_forward.1} parent=11 // pred_fallthru
          _
        // Predicated region
        $region21: #{cswf_forward.1} parent=11 // pred_check
          %p401 = pneg %p153
        $region22: #{cswf_forward.1} parent=11 // pred_check_branch
          %403 = sbr.rel (%p401) target = $region24
        $region23: #{cswf_forward.1} parent=11 // pred_region
          _
        $region24: #{cswf_forward.1} parent=11 // pred_fallthru
          _
        // Predicated region
        $region25: #{cswf_forward.1} parent=11 // pred_check
          %p404 = pneg %p174
        $region26: #{cswf_forward.1} parent=11 // pred_check_branch
          %406 = sbr.rel (%p404) target = $region28
        $region27: #{cswf_forward.1} parent=11 // pred_region
          _
        $region28: #{cswf_forward.1} parent=11 // pred_fallthru
          _
        // Predicated region
        $region29: #{cswf_forward.1} parent=11 // pred_check
          %p407 = pneg %p195
        $region30: #{cswf_forward.1} parent=11 // pred_check_branch
          %409 = sbr.rel (%p407) target = $region32
        $region31: #{cswf_forward.1} parent=11 // pred_region
          %s411 = ssub.s32 512, 512
          %412 = vsyncadd [#allocation7], %s411
          %s413 = sshll.u32 [#allocation6], 4
          %s414 = int_to_ptr.vmem [resolvable:$true] %s413
          %419 = dma.hbm_to_vmem [thread:$0]  %s6, 512, %s414, [#allocation7], 64, 64, 4
        $region32: #{cswf_forward.1} parent=11 // pred_fallthru
          _
        // Predicated region
        $region33: #{cswf_forward.1} parent=11 // pred_check
          %p420 = pneg %p216
        $region34: #{cswf_forward.1} parent=11 // pred_check_branch
          %422 = sbr.rel (%p420) target = $region36
        $region35: #{cswf_forward.1} parent=11 // pred_region
          _
        $region36: #{cswf_forward.1} parent=11 // pred_fallthru
          _
        // Predicated region
        $region37: #{cswf_forward.1} parent=11 // pred_check
          %p423 = pneg %p237
        $region38: #{cswf_forward.1} parent=11 // pred_check_branch
          %425 = sbr.rel (%p423) target = $region40
        $region39: #{cswf_forward.1} parent=11 // pred_region
          _
        $region40: #{cswf_forward.1} parent=11 // pred_fallthru
          _
        // Predicated region
        $region41: #{cswf_forward.1} parent=11 // pred_check
          %p426 = pneg %p258
        $region42: #{cswf_forward.1} parent=11 // pred_check_branch
          %428 = sbr.rel (%p426) target = $region44
        $region43: #{cswf_forward.1} parent=11 // pred_region
          _
        $region44: #{cswf_forward.1} parent=11 // pred_fallthru
          _
        // Predicated region
        $region45: #{cswf_forward.1} parent=11 // pred_check
          %p429 = pneg %p279
        $region46: #{cswf_forward.1} parent=11 // pred_check_branch
          %431 = sbr.rel (%p429) target = $region48
        $region47: #{cswf_forward.1} parent=11 // pred_region
          %s433 = ssub.s32 512, 512
          %434 = vsyncadd [#allocation7], %s433
          %s435 = sshll.u32 [#allocation8], 4
          %s436 = int_to_ptr.vmem [resolvable:$true] %s435
          %441 = dma.hbm_to_vmem [thread:$0]  %s10, 512, %s436, [#allocation7], 64, 64, 4
        $region48: #{cswf_forward.1} parent=11 // pred_fallthru
          _
        // Predicated region
        $region49: #{cswf_forward.1} parent=11 // pred_check
          %p442 = pneg %p300
        $region50: #{cswf_forward.1} parent=11 // pred_check_branch
          %444 = sbr.rel (%p442) target = $region52
        $region51: #{cswf_forward.1} parent=11 // pred_region
          _
        $region52: #{cswf_forward.1} parent=11 // pred_fallthru
          _
        // Predicated region
        $region53: #{cswf_forward.1} parent=11 // pred_check
          %p445 = pneg %p321
        $region54: #{cswf_forward.1} parent=11 // pred_check_branch
          %447 = sbr.rel (%p445) target = $region56
        $region55: #{cswf_forward.1} parent=11 // pred_region
          _
        $region56: #{cswf_forward.1} parent=11 // pred_fallthru
          _
        // Predicated region
        $region57: #{cswf_forward.1} parent=11 // pred_check
          %p448 = pneg %p342
        $region58: #{cswf_forward.1} parent=11 // pred_check_branch
          %450 = sbr.rel (%p448) target = $region60
        $region59: #{cswf_forward.1} parent=11 // pred_region
          _
        $region60: #{cswf_forward.1} parent=11 // pred_fallthru
          _
      $region12: #{cswf_forward.1} parent=5 // pred_fallthru
        _
      %p451 = scmp.lt.s32.totalorder %s22, 4
      // Predicated region
      $region61: #{cswf_forward.1} parent=5 // pred_check
        %p452 = pneg %p451
      $region62: #{cswf_forward.1} parent=5 // pred_check_branch
        %454 = sbr.rel (%p452) target = $region64
      $region63: #{cswf_forward.1} parent=5 // pred_region
        // Predicated region
        $region65: #{cswf_forward.1} parent=63 // pred_check
          %p455 = pneg %p56
        $region66: #{cswf_forward.1} parent=63 // pred_check_branch
          %457 = sbr.rel (%p455) target = $region68
        $region67: #{cswf_forward.1} parent=63 // pred_region
          %s458 = sand.u32 %s46, 1
          %s459 = sand.u32 %s46, 1
          %s460 = smul.addr %s459, 64
          %s461 = scalar_lea.vmem [#allocation2], %s460
          %s462 = smul.addr %s29, 32
          %s463 = sadd.s32 %s30, %s462
          %s464 = smul.addr %s463, 4
          %s465 = scalar_lea.vmem %s0, %s464
          // Predicated region
          $region69: #{cswf_forward.1} parent=67 // pred_check
            _
          $region70: #{cswf_forward.1} parent=67 // pred_check_branch
            %467 = sbr.rel (0) target = $region72
          $region71: #{cswf_forward.1} parent=67 // pred_region
            // Predicated region
            $region73: #{cswf_forward.1} parent=71 // pred_check
              _
            $region74: #{cswf_forward.1} parent=71 // pred_check_branch
              %469 = sbr.rel target = $region76
            $region75: #{cswf_forward.1} parent=71 // pred_region
              // Predicated region
              $region88: #{cswf_forward.1} parent=75 // pred_check
                _
              $region89: #{cswf_forward.1} parent=75 // pred_check_branch
                %515 = sbr.rel (0) target = $region91
              $region90: #{cswf_forward.1} parent=75 // pred_region
                loop: start=0, step=1, limit=1
                $region92: #{cswf_forward.1} parent=90 // loop_pre_header
                  _
                $region93: #{cswf_forward.1} parent=90 // loop_header
                  %s517 = sphi 0, %s521
                  %p518 = scmp.ge.s32.totalorder %s517, 1
                  %s522 = sphi %s465, %s465
                  %s523 = sphi %s461, %s461
                $region94: #{cswf_forward.1} parent=90 // loop_header_branch
                  %520 = sbr.rel (%p518) target = $region98
                $region95: #{cswf_forward.1} parent=90 // loop_body
                  _
                $region96: #{cswf_forward.1} parent=90 // loop_footer
                  %s521 = sadd.s32 1, %s517
                $region97: #{cswf_forward.1} parent=90 // loop_footer_branch
                  %516 = sbr.rel target = $region93
                $region98: #{cswf_forward.1} parent=90 // loop_exit
                  _
                %s525 = ssub.s32 16, 1
                loop: start=0, step=1, limit=1
                $region99: #{cswf_forward.1} parent=90 // loop_pre_header
                  _
                $region100: #{cswf_forward.1} parent=90 // loop_header
                  %s527 = sphi 0, %s531
                  %p528 = scmp.ge.s32.totalorder %s527, 1
                  %s532 = sphi %s465, %s465
                  %s533 = sphi %s461, %s461
                $region101: #{cswf_forward.1} parent=90 // loop_header_branch
                  %530 = sbr.rel (%p528) target = $region105
                $region102: #{cswf_forward.1} parent=90 // loop_body
                  %v534 = vld [vmem:[%s532] sm:%s525]
                  %535 = vst [vmem:[%s533] sm:%s525] %v534
                  %v536 = vld [vmem:[%s532 + $0x8] sm:%s525]
                  %537 = vst [vmem:[%s533 + $0x4] sm:%s525] %v536
                  %v538 = vld [vmem:[%s532 + $0x10] sm:%s525]
                  %539 = vst [vmem:[%s533 + $0x8] sm:%s525] %v538
                  %v540 = vld [vmem:[%s532 + $0x18] sm:%s525]
                  %541 = vst [vmem:[%s533 + $0xc] sm:%s525] %v540
                  %v542 = vld [vmem:[%s532 + $0x20] sm:%s525]
                  %543 = vst [vmem:[%s533 + $0x10] sm:%s525] %v542
                  %v544 = vld [vmem:[%s532 + $0x28] sm:%s525]
                  %545 = vst [vmem:[%s533 + $0x14] sm:%s525] %v544
                  %v546 = vld [vmem:[%s532 + $0x30] sm:%s525]
                  %547 = vst [vmem:[%s533 + $0x18] sm:%s525] %v546
                  %v548 = vld [vmem:[%s532 + $0x38] sm:%s525]
                  %549 = vst [vmem:[%s533 + $0x1c] sm:%s525] %v548
                  %v550 = vld [vmem:[%s532 + $0x40] sm:%s525]
                  %551 = vst [vmem:[%s533 + $0x20] sm:%s525] %v550
                  %v552 = vld [vmem:[%s532 + $0x48] sm:%s525]
                  %553 = vst [vmem:[%s533 + $0x24] sm:%s525] %v552
                  %v554 = vld [vmem:[%s532 + $0x50] sm:%s525]
                  %555 = vst [vmem:[%s533 + $0x28] sm:%s525] %v554
                  %v556 = vld [vmem:[%s532 + $0x58] sm:%s525]
                  %557 = vst [vmem:[%s533 + $0x2c] sm:%s525] %v556
                  %v558 = vld [vmem:[%s532 + $0x60] sm:%s525]
                  %559 = vst [vmem:[%s533 + $0x30] sm:%s525] %v558
                  %v560 = vld [vmem:[%s532 + $0x68] sm:%s525]
                  %561 = vst [vmem:[%s533 + $0x34] sm:%s525] %v560
                  %v562 = vld [vmem:[%s532 + $0x70] sm:%s525]
                  %563 = vst [vmem:[%s533 + $0x38] sm:%s525] %v562
                  %v564 = vld [vmem:[%s532 + $0x78] sm:%s525]
                  %565 = vst [vmem:[%s533 + $0x3c] sm:%s525] %v564
                $region103: #{cswf_forward.1} parent=90 // loop_footer
                  %s531 = sadd.s32 1, %s527
                $region104: #{cswf_forward.1} parent=90 // loop_footer_branch
                  %526 = sbr.rel target = $region100
                $region105: #{cswf_forward.1} parent=90 // loop_exit
                  _
              $region91: #{cswf_forward.1} parent=75 // pred_fallthru
                _
            $region76: #{cswf_forward.1} parent=71 // pred_fallthru
              _
            // Predicated region
            $region77: #{cswf_forward.1} parent=71 // pred_check
              _
            $region78: #{cswf_forward.1} parent=71 // pred_check_branch
              %471 = sbr.rel (0) target = $region80
            $region79: #{cswf_forward.1} parent=71 // pred_region
              %s473 = ssub.s32 16, 1
              loop: start=0, step=1, limit=1
              $region81: #{cswf_forward.1} parent=79 // loop_pre_header
                _
              $region82: #{cswf_forward.1} parent=79 // loop_header
                %s475 = sphi 0, %s479
                %p476 = scmp.ge.s32.totalorder %s475, 1
                %s480 = sphi %s465, %s465
                %s481 = sphi %s461, %s461
              $region83: #{cswf_forward.1} parent=79 // loop_header_branch
                %478 = sbr.rel (%p476) target = $region87
              $region84: #{cswf_forward.1} parent=79 // loop_body
                %v482 = vld [vmem:[%s480] sm:%s473]
                %483 = vst [vmem:[%s481] sm:%s473] %v482
                %v484 = vld [vmem:[%s480 + $0x8] sm:%s473]
                %485 = vst [vmem:[%s481 + $0x4] sm:%s473] %v484
                %v486 = vld [vmem:[%s480 + $0x10] sm:%s473]
                %487 = vst [vmem:[%s481 + $0x8] sm:%s473] %v486
                %v488 = vld [vmem:[%s480 + $0x18] sm:%s473]
                %489 = vst [vmem:[%s481 + $0xc] sm:%s473] %v488
                %v490 = vld [vmem:[%s480 + $0x20] sm:%s473]
                %491 = vst [vmem:[%s481 + $0x10] sm:%s473] %v490
                %v492 = vld [vmem:[%s480 + $0x28] sm:%s473]
                %493 = vst [vmem:[%s481 + $0x14] sm:%s473] %v492
                %v494 = vld [vmem:[%s480 + $0x30] sm:%s473]
                %495 = vst [vmem:[%s481 + $0x18] sm:%s473] %v494
                %v496 = vld [vmem:[%s480 + $0x38] sm:%s473]
                %497 = vst [vmem:[%s481 + $0x1c] sm:%s473] %v496
                %v498 = vld [vmem:[%s480 + $0x40] sm:%s473]
                %499 = vst [vmem:[%s481 + $0x20] sm:%s473] %v498
                %v500 = vld [vmem:[%s480 + $0x48] sm:%s473]
                %501 = vst [vmem:[%s481 + $0x24] sm:%s473] %v500
                %v502 = vld [vmem:[%s480 + $0x50] sm:%s473]
                %503 = vst [vmem:[%s481 + $0x28] sm:%s473] %v502
                %v504 = vld [vmem:[%s480 + $0x58] sm:%s473]
                %505 = vst [vmem:[%s481 + $0x2c] sm:%s473] %v504
                %v506 = vld [vmem:[%s480 + $0x60] sm:%s473]
                %507 = vst [vmem:[%s481 + $0x30] sm:%s473] %v506
                %v508 = vld [vmem:[%s480 + $0x68] sm:%s473]
                %509 = vst [vmem:[%s481 + $0x34] sm:%s473] %v508
                %v510 = vld [vmem:[%s480 + $0x70] sm:%s473]
                %511 = vst [vmem:[%s481 + $0x38] sm:%s473] %v510
                %v512 = vld [vmem:[%s480 + $0x78] sm:%s473]
                %513 = vst [vmem:[%s481 + $0x3c] sm:%s473] %v512
              $region85: #{cswf_forward.1} parent=79 // loop_footer
                %s479 = sadd.s32 1, %s475
              $region86: #{cswf_forward.1} parent=79 // loop_footer_branch
                %474 = sbr.rel target = $region82
              $region87: #{cswf_forward.1} parent=79 // loop_exit
                _
            $region80: #{cswf_forward.1} parent=71 // pred_fallthru
              _
          $region72: #{cswf_forward.1} parent=67 // pred_fallthru
            _
          %566 = vnop
        $region68: #{cswf_forward.1} parent=63 // pred_fallthru
          _
        // Predicated region
        $region106: #{cswf_forward.1} parent=63 // pred_check
          %p567 = pneg %p84
        $region107: #{cswf_forward.1} parent=63 // pred_check_branch
          %569 = sbr.rel (%p567) target = $region109
        $region108: #{cswf_forward.1} parent=63 // pred_region
          %s570 = sand.u32 %s74, 1
          %s571 = sand.u32 %s74, 1
          %s572 = smul.addr %s571, 64
          %s573 = scalar_lea.vmem [#allocation3], %s572
          %s574 = smul.addr %s29, 32
          %s575 = sadd.s32 %s30, %s574
          %s576 = smul.addr %s575, 4
          %s577 = scalar_lea.vmem %s1, %s576
          // Predicated region
          $region110: #{cswf_forward.1} parent=108 // pred_check
            _
          $region111: #{cswf_forward.1} parent=108 // pred_check_branch
            %579 = sbr.rel (0) target = $region113
          $region112: #{cswf_forward.1} parent=108 // pred_region
            // Predicated region
            $region114: #{cswf_forward.1} parent=112 // pred_check
              _
            $region115: #{cswf_forward.1} parent=112 // pred_check_branch
              %581 = sbr.rel target = $region117
            $region116: #{cswf_forward.1} parent=112 // pred_region
              // Predicated region
              $region129: #{cswf_forward.1} parent=116 // pred_check
                _
              $region130: #{cswf_forward.1} parent=116 // pred_check_branch
                %627 = sbr.rel (0) target = $region132
              $region131: #{cswf_forward.1} parent=116 // pred_region
                loop: start=0, step=1, limit=1
                $region133: #{cswf_forward.1} parent=131 // loop_pre_header
                  _
                $region134: #{cswf_forward.1} parent=131 // loop_header
                  %s629 = sphi 0, %s633
                  %p630 = scmp.ge.s32.totalorder %s629, 1
                  %s634 = sphi %s577, %s577
                  %s635 = sphi %s573, %s573
                $region135: #{cswf_forward.1} parent=131 // loop_header_branch
                  %632 = sbr.rel (%p630) target = $region139
                $region136: #{cswf_forward.1} parent=131 // loop_body
                  _
                $region137: #{cswf_forward.1} parent=131 // loop_footer
                  %s633 = sadd.s32 1, %s629
                $region138: #{cswf_forward.1} parent=131 // loop_footer_branch
                  %628 = sbr.rel target = $region134
                $region139: #{cswf_forward.1} parent=131 // loop_exit
                  _
                %s637 = ssub.s32 16, 1
                loop: start=0, step=1, limit=1
                $region140: #{cswf_forward.1} parent=131 // loop_pre_header
                  _
                $region141: #{cswf_forward.1} parent=131 // loop_header
                  %s639 = sphi 0, %s643
                  %p640 = scmp.ge.s32.totalorder %s639, 1
                  %s644 = sphi %s577, %s577
                  %s645 = sphi %s573, %s573
                $region142: #{cswf_forward.1} parent=131 // loop_header_branch
                  %642 = sbr.rel (%p640) target = $region146
                $region143: #{cswf_forward.1} parent=131 // loop_body
                  %v646 = vld [vmem:[%s644] sm:%s637]
                  %647 = vst [vmem:[%s645] sm:%s637] %v646
                  %v648 = vld [vmem:[%s644 + $0x8] sm:%s637]
                  %649 = vst [vmem:[%s645 + $0x4] sm:%s637] %v648
                  %v650 = vld [vmem:[%s644 + $0x10] sm:%s637]
                  %651 = vst [vmem:[%s645 + $0x8] sm:%s637] %v650
                  %v652 = vld [vmem:[%s644 + $0x18] sm:%s637]
                  %653 = vst [vmem:[%s645 + $0xc] sm:%s637] %v652
                  %v654 = vld [vmem:[%s644 + $0x20] sm:%s637]
                  %655 = vst [vmem:[%s645 + $0x10] sm:%s637] %v654
                  %v656 = vld [vmem:[%s644 + $0x28] sm:%s637]
                  %657 = vst [vmem:[%s645 + $0x14] sm:%s637] %v656
                  %v658 = vld [vmem:[%s644 + $0x30] sm:%s637]
                  %659 = vst [vmem:[%s645 + $0x18] sm:%s637] %v658
                  %v660 = vld [vmem:[%s644 + $0x38] sm:%s637]
                  %661 = vst [vmem:[%s645 + $0x1c] sm:%s637] %v660
                  %v662 = vld [vmem:[%s644 + $0x40] sm:%s637]
                  %663 = vst [vmem:[%s645 + $0x20] sm:%s637] %v662
                  %v664 = vld [vmem:[%s644 + $0x48] sm:%s637]
                  %665 = vst [vmem:[%s645 + $0x24] sm:%s637] %v664
                  %v666 = vld [vmem:[%s644 + $0x50] sm:%s637]
                  %667 = vst [vmem:[%s645 + $0x28] sm:%s637] %v666
                  %v668 = vld [vmem:[%s644 + $0x58] sm:%s637]
                  %669 = vst [vmem:[%s645 + $0x2c] sm:%s637] %v668
                  %v670 = vld [vmem:[%s644 + $0x60] sm:%s637]
                  %671 = vst [vmem:[%s645 + $0x30] sm:%s637] %v670
                  %v672 = vld [vmem:[%s644 + $0x68] sm:%s637]
                  %673 = vst [vmem:[%s645 + $0x34] sm:%s637] %v672
                  %v674 = vld [vmem:[%s644 + $0x70] sm:%s637]
                  %675 = vst [vmem:[%s645 + $0x38] sm:%s637] %v674
                  %v676 = vld [vmem:[%s644 + $0x78] sm:%s637]
                  %677 = vst [vmem:[%s645 + $0x3c] sm:%s637] %v676
                $region144: #{cswf_forward.1} parent=131 // loop_footer
                  %s643 = sadd.s32 1, %s639
                $region145: #{cswf_forward.1} parent=131 // loop_footer_branch
                  %638 = sbr.rel target = $region141
                $region146: #{cswf_forward.1} parent=131 // loop_exit
                  _
              $region132: #{cswf_forward.1} parent=116 // pred_fallthru
                _
            $region117: #{cswf_forward.1} parent=112 // pred_fallthru
              _
            // Predicated region
            $region118: #{cswf_forward.1} parent=112 // pred_check
              _
            $region119: #{cswf_forward.1} parent=112 // pred_check_branch
              %583 = sbr.rel (0) target = $region121
            $region120: #{cswf_forward.1} parent=112 // pred_region
              %s585 = ssub.s32 16, 1
              loop: start=0, step=1, limit=1
              $region122: #{cswf_forward.1} parent=120 // loop_pre_header
                _
              $region123: #{cswf_forward.1} parent=120 // loop_header
                %s587 = sphi 0, %s591
                %p588 = scmp.ge.s32.totalorder %s587, 1
                %s592 = sphi %s577, %s577
                %s593 = sphi %s573, %s573
              $region124: #{cswf_forward.1} parent=120 // loop_header_branch
                %590 = sbr.rel (%p588) target = $region128
              $region125: #{cswf_forward.1} parent=120 // loop_body
                %v594 = vld [vmem:[%s592] sm:%s585]
                %595 = vst [vmem:[%s593] sm:%s585] %v594
                %v596 = vld [vmem:[%s592 + $0x8] sm:%s585]
                %597 = vst [vmem:[%s593 + $0x4] sm:%s585] %v596
                %v598 = vld [vmem:[%s592 + $0x10] sm:%s585]
                %599 = vst [vmem:[%s593 + $0x8] sm:%s585] %v598
                %v600 = vld [vmem:[%s592 + $0x18] sm:%s585]
                %601 = vst [vmem:[%s593 + $0xc] sm:%s585] %v600
                %v602 = vld [vmem:[%s592 + $0x20] sm:%s585]
                %603 = vst [vmem:[%s593 + $0x10] sm:%s585] %v602
                %v604 = vld [vmem:[%s592 + $0x28] sm:%s585]
                %605 = vst [vmem:[%s593 + $0x14] sm:%s585] %v604
                %v606 = vld [vmem:[%s592 + $0x30] sm:%s585]
                %607 = vst [vmem:[%s593 + $0x18] sm:%s585] %v606
                %v608 = vld [vmem:[%s592 + $0x38] sm:%s585]
                %609 = vst [vmem:[%s593 + $0x1c] sm:%s585] %v608
                %v610 = vld [vmem:[%s592 + $0x40] sm:%s585]
                %611 = vst [vmem:[%s593 + $0x20] sm:%s585] %v610
                %v612 = vld [vmem:[%s592 + $0x48] sm:%s585]
                %613 = vst [vmem:[%s593 + $0x24] sm:%s585] %v612
                %v614 = vld [vmem:[%s592 + $0x50] sm:%s585]
                %615 = vst [vmem:[%s593 + $0x28] sm:%s585] %v614
                %v616 = vld [vmem:[%s592 + $0x58] sm:%s585]
                %617 = vst [vmem:[%s593 + $0x2c] sm:%s585] %v616
                %v618 = vld [vmem:[%s592 + $0x60] sm:%s585]
                %619 = vst [vmem:[%s593 + $0x30] sm:%s585] %v618
                %v620 = vld [vmem:[%s592 + $0x68] sm:%s585]
                %621 = vst [vmem:[%s593 + $0x34] sm:%s585] %v620
                %v622 = vld [vmem:[%s592 + $0x70] sm:%s585]
                %623 = vst [vmem:[%s593 + $0x38] sm:%s585] %v622
                %v624 = vld [vmem:[%s592 + $0x78] sm:%s585]
                %625 = vst [vmem:[%s593 + $0x3c] sm:%s585] %v624
              $region126: #{cswf_forward.1} parent=120 // loop_footer
                %s591 = sadd.s32 1, %s587
              $region127: #{cswf_forward.1} parent=120 // loop_footer_branch
                %586 = sbr.rel target = $region123
              $region128: #{cswf_forward.1} parent=120 // loop_exit
                _
            $region121: #{cswf_forward.1} parent=112 // pred_fallthru
              _
          $region113: #{cswf_forward.1} parent=108 // pred_fallthru
            _
          %678 = vnop
        $region109: #{cswf_forward.1} parent=63 // pred_fallthru
          _
      $region64: #{cswf_forward.1} parent=5 // pred_fallthru
        _
      %p679 = scmp.le.s32.totalorder 1, %s22
      %p680 = scmp.lt.s32.totalorder %s22, 5
      %p681 = pnand %p679, %p680
      %p682 = pneg %p681
      // Predicated region
      $region147: #{cswf_forward.1} parent=5 // pred_check
        _
      $region148: #{cswf_forward.1} parent=5 // pred_check_branch
        %684 = sbr.rel (%p681) target = $region150
      $region149: #{cswf_forward.1} parent=5 // pred_region
        %s685 = ssub.s32 %s22, 1
        %s686 = sand.u32 %s49, 1
        %s687 = sand.u32 %s49, 1
        %s688 = smul.addr %s687, 64
        %s689 = scalar_lea.vmem [#allocation2], %s688
        // Predicated region
        $region151: #{cswf_forward.1} parent=149 // pred_check
          %p690 = pneg %p62
        $region152: #{cswf_forward.1} parent=149 // pred_check_branch
          %692 = sbr.rel (%p690) target = $region154
        $region153: #{cswf_forward.1} parent=149 // pred_region
          _
        $region154: #{cswf_forward.1} parent=149 // pred_fallthru
          _
        %s693 = sand.u32 %s77, 1
        %s694 = sand.u32 %s77, 1
        %s695 = smul.addr %s694, 64
        %s696 = scalar_lea.vmem [#allocation3], %s695
        // Predicated region
        $region155: #{cswf_forward.1} parent=149 // pred_check
          %p697 = pneg %p90
        $region156: #{cswf_forward.1} parent=149 // pred_check_branch
          %699 = sbr.rel (%p697) target = $region158
        $region157: #{cswf_forward.1} parent=149 // pred_region
          _
        $region158: #{cswf_forward.1} parent=149 // pred_fallthru
          _
        // Predicated region
        $region159: #{cswf_forward.1} parent=149 // pred_check
          %p700 = pneg %p111
        $region160: #{cswf_forward.1} parent=149 // pred_check_branch
          %702 = sbr.rel (%p700) target = $region162
        $region161: #{cswf_forward.1} parent=149 // pred_region
          %703 = dma.done [#allocation5], 512
        $region162: #{cswf_forward.1} parent=149 // pred_fallthru
          _
        // Predicated region
        $region163: #{cswf_forward.1} parent=149 // pred_check
          %p704 = pneg %p195
        $region164: #{cswf_forward.1} parent=149 // pred_check_branch
          %706 = sbr.rel (%p704) target = $region166
        $region165: #{cswf_forward.1} parent=149 // pred_region
          %707 = dma.done [#allocation7], 512
        $region166: #{cswf_forward.1} parent=149 // pred_fallthru
          _
        // Predicated region
        $region167: #{cswf_forward.1} parent=149 // pred_check
          %p708 = pneg %p279
        $region168: #{cswf_forward.1} parent=149 // pred_check_branch
          %710 = sbr.rel (%p708) target = $region170
        $region169: #{cswf_forward.1} parent=149 // pred_region
          %711 = dma.done [#allocation7], 512
        $region170: #{cswf_forward.1} parent=149 // pred_fallthru
          _
        %s712 = sand.u32 %s49, 1
        %s713 = sand.u32 %s49, 1
        %s714 = smul.addr %s713, 64
        %s715 = scalar_lea.vmem [#allocation2], %s714
        %p716 = pneg %p62
        %p717 = pneg %p59
        %s718 = sand.u32 %s77, 1
        %s719 = sand.u32 %s77, 1
        %s720 = smul.addr %s719, 64
        %s721 = scalar_lea.vmem [#allocation3], %s720
        %p722 = pneg %p90
        %p723 = pneg %p87
        %p724 = pneg %p111
        %p725 = pneg %p108
        %p726 = pneg %p132
        %p727 = pneg %p129
        %p728 = pneg %p153
        %p729 = pneg %p150
        %p730 = pneg %p174
        %p731 = pneg %p171
        %p732 = pneg %p195
        %p733 = pneg %p192
        %p734 = pneg %p216
        %p735 = pneg %p213
        %p736 = pneg %p237
        %p737 = pneg %p234
        %p738 = pneg %p258
        %p739 = pneg %p255
        %p740 = pneg %p279
        %p741 = pneg %p276
        %p742 = pneg %p300
        %p743 = pneg %p297
        %p744 = pneg %p321
        %p745 = pneg %p318
        %p746 = pneg %p342
        %p747 = pneg %p339
        %p748 = pneg %p370
        %p749 = pneg %p367
        %s750 = sand.u32 %s357, 1
        %s751 = sand.u32 %s357, 1
        %s752 = smul.addr %s751, 128
        %s753 = scalar_lea.vmem [#allocation9], %s752
        %v755 = vld [vmem:[%s689] sm:$0xf]
        %v756 = vld [vmem:[%s689 + $0x4] sm:$0xf]
        %v757 = vld [vmem:[%s689 + $0x8] sm:$0xf]
        %v758 = vld [vmem:[%s689 + $0xc] sm:$0xf]
        %v759 = vld [vmem:[%s689 + $0x10] sm:$0xf]
        %v760 = vld [vmem:[%s689 + $0x14] sm:$0xf]
        %v761 = vld [vmem:[%s689 + $0x18] sm:$0xf]
        %v762 = vld [vmem:[%s689 + $0x1c] sm:$0xf]
        %v763 = vld [vmem:[%s689 + $0x20] sm:$0xf]
        %v764 = vld [vmem:[%s689 + $0x24] sm:$0xf]
        %v765 = vld [vmem:[%s689 + $0x28] sm:$0xf]
        %v766 = vld [vmem:[%s689 + $0x2c] sm:$0xf]
        %v767 = vld [vmem:[%s689 + $0x30] sm:$0xf]
        %v768 = vld [vmem:[%s689 + $0x34] sm:$0xf]
        %v769 = vld [vmem:[%s689 + $0x38] sm:$0xf]
        %v770 = vld [vmem:[%s689 + $0x3c] sm:$0xf]
        %v771 = vunpack.c.l.bf16 %v755
        %v772 = vunpack.c.l.bf16 %v756
        %v773 = vunpack.c.l.bf16 %v757
        %v774 = vunpack.c.l.bf16 %v758
        %v775 = vunpack.c.l.bf16 %v759
        %v776 = vunpack.c.l.bf16 %v760
        %v777 = vunpack.c.l.bf16 %v761
        %v778 = vunpack.c.l.bf16 %v762
        %v779 = vunpack.c.l.bf16 %v763
        %v780 = vunpack.c.l.bf16 %v764
        %v781 = vunpack.c.l.bf16 %v765
        %v782 = vunpack.c.l.bf16 %v766
        %v783 = vunpack.c.l.bf16 %v767
        %v784 = vunpack.c.l.bf16 %v768
        %v785 = vunpack.c.l.bf16 %v769
        %v786 = vunpack.c.l.bf16 %v770
        %v787 = vld [vmem:[%s696] sm:$0xf]
        %v788 = vld [vmem:[%s696 + $0x4] sm:$0xf]
        %v789 = vld [vmem:[%s696 + $0x8] sm:$0xf]
        %v790 = vld [vmem:[%s696 + $0xc] sm:$0xf]
        %v791 = vld [vmem:[%s696 + $0x10] sm:$0xf]
        %v792 = vld [vmem:[%s696 + $0x14] sm:$0xf]
        %v793 = vld [vmem:[%s696 + $0x18] sm:$0xf]
        %v794 = vld [vmem:[%s696 + $0x1c] sm:$0xf]
        %v795 = vld [vmem:[%s696 + $0x20] sm:$0xf]
        %v796 = vld [vmem:[%s696 + $0x24] sm:$0xf]
        %v797 = vld [vmem:[%s696 + $0x28] sm:$0xf]
        %v798 = vld [vmem:[%s696 + $0x2c] sm:$0xf]
        %v799 = vld [vmem:[%s696 + $0x30] sm:$0xf]
        %v800 = vld [vmem:[%s696 + $0x34] sm:$0xf]
        %v801 = vld [vmem:[%s696 + $0x38] sm:$0xf]
        %v802 = vld [vmem:[%s696 + $0x3c] sm:$0xf]
        %v803 = vunpack.c.l.bf16 %v787
        %v804 = vunpack.c.l.bf16 %v788
        %v805 = vunpack.c.l.bf16 %v789
        %v806 = vunpack.c.l.bf16 %v790
        %v807 = vunpack.c.l.bf16 %v791
        %v808 = vunpack.c.l.bf16 %v792
        %v809 = vunpack.c.l.bf16 %v793
        %v810 = vunpack.c.l.bf16 %v794
        %v811 = vunpack.c.l.bf16 %v795
        %v812 = vunpack.c.l.bf16 %v796
        %v813 = vunpack.c.l.bf16 %v797
        %v814 = vunpack.c.l.bf16 %v798
        %v815 = vunpack.c.l.bf16 %v799
        %v816 = vunpack.c.l.bf16 %v800
        %v817 = vunpack.c.l.bf16 %v801
        %v818 = vunpack.c.l.bf16 %v802
        %v819 = vadd.f32 %v771, %v803
        %v820 = vadd.f32 %v772, %v804
        %v821 = vadd.f32 %v773, %v805
        %v822 = vadd.f32 %v774, %v806
        %v823 = vadd.f32 %v775, %v807
        %v824 = vadd.f32 %v776, %v808
        %v825 = vadd.f32 %v777, %v809
        %v826 = vadd.f32 %v778, %v810
        %v827 = vadd.f32 %v779, %v811
        %v828 = vadd.f32 %v780, %v812
        %v829 = vadd.f32 %v781, %v813
        %v830 = vadd.f32 %v782, %v814
        %v831 = vadd.f32 %v783, %v815
        %v832 = vadd.f32 %v784, %v816
        %v833 = vadd.f32 %v785, %v817
        %v834 = vadd.f32 %v786, %v818
        %v835 = vpack.c.bf16 %v820, %v819
        %v836 = vpack.c.bf16 %v822, %v821
        %v837 = vpack.c.bf16 %v824, %v823
        %v838 = vpack.c.bf16 %v826, %v825
        %v839 = vpack.c.bf16 %v828, %v827
        %v840 = vpack.c.bf16 %v830, %v829
        %v841 = vpack.c.bf16 %v832, %v831
        %v842 = vpack.c.bf16 %v834, %v833
        %v843 = vld [vmem:[#allocation4] sm:$0xf]
        %v844 = vld [vmem:[#allocation4 + $0x4] sm:$0xf]
        %v845 = vld [vmem:[#allocation4 + $0x8] sm:$0xf]
        %v846 = vld [vmem:[#allocation4 + $0xc] sm:$0xf]
        %v847 = vld [vmem:[#allocation4 + $0x10] sm:$0xf]
        %v848 = vld [vmem:[#allocation4 + $0x14] sm:$0xf]
        %v849 = vld [vmem:[#allocation4 + $0x18] sm:$0xf]
        %v850 = vld [vmem:[#allocation4 + $0x1c] sm:$0xf]
        %v851 = vld [vmem:[%s3] sm:$0xff]
        %v852 = vld [vmem:[%s3 + $0x8] sm:$0xff]
        %v853 = vld [vmem:[%s3 + $0x10] sm:$0xff]
        %v854 = vld [vmem:[%s3 + $0x18] sm:$0xff]
        %v855 = vld [vmem:[%s3 + $0x20] sm:$0xff]
        %v856 = vld [vmem:[%s3 + $0x28] sm:$0xff]
        %v857 = vld [vmem:[%s3 + $0x30] sm:$0xff]
        %v858 = vld [vmem:[%s3 + $0x38] sm:$0xff]
        %860 = vset.pattern.permute.xlu0 0
        %861 = vperm.xlu0 %860, %v851
        %v862 = vpop.permute.xlu0 %861
        %865 = vset.pattern.permute.xlu0 0
        %866 = vperm.xlu0 %865, %v852
        %v867 = vpop.permute.xlu0 %866
        %870 = vset.pattern.permute.xlu0 0
        %871 = vperm.xlu0 %870, %v853
        %v872 = vpop.permute.xlu0 %871
        %875 = vset.pattern.permute.xlu0 0
        %876 = vperm.xlu0 %875, %v854
        %v877 = vpop.permute.xlu0 %876
        %880 = vset.pattern.permute.xlu0 0
        %881 = vperm.xlu0 %880, %v855
        %v882 = vpop.permute.xlu0 %881
        %885 = vset.pattern.permute.xlu0 0
        %886 = vperm.xlu0 %885, %v856
        %v887 = vpop.permute.xlu0 %886
        %890 = vset.pattern.permute.xlu0 0
        %891 = vperm.xlu0 %890, %v857
        %v892 = vpop.permute.xlu0 %891
        %895 = vset.pattern.permute.xlu0 0
        %896 = vperm.xlu0 %895, %v858
        %v897 = vpop.permute.xlu0 %896
        %v907 = vunpack.c.l.b16 %v843
        %v908 = vunpack.c.l.b16 %v844
        %v909 = vunpack.c.l.b16 %v845
        %v910 = vunpack.c.l.b16 %v846
        %v911 = vunpack.c.l.b16 %v847
        %v912 = vunpack.c.l.b16 %v848
        %v913 = vunpack.c.l.b16 %v849
        %v914 = vunpack.c.l.b16 %v850
        %v915 = vpack.c.b16 %v908, %v907
        %v916 = vpack.c.b16 %v910, %v909
        %v917 = vpack.c.b16 %v912, %v911
        %v918 = vpack.c.b16 %v914, %v913
        %923 = vmatprep.subr.bf16.mxu0 0
        %924 = vmatpush1.bf16.msra.mxu0 %v842
        %925 = vmatprep.subr.bf16.mxu0 0
        %926 = vmatpush1.bf16.msra.mxu0 %v841
        %927 = vmatprep.subr.bf16.mxu0 0
        %928 = vmatpush1.bf16.msra.mxu0 %v840
        %929 = vmatprep.subr.bf16.mxu0 0
        %930 = vmatpush1.bf16.msra.mxu0 %v839
        %931 = vmatprep.subr.bf16.mxu0 0
        %932 = vmatpush1.bf16.msra.mxu0 %v838
        %933 = vmatprep.subr.bf16.mxu0 0
        %934 = vmatpush1.bf16.msra.mxu0 %v837
        %935 = vmatprep.subr.bf16.mxu0 0
        %936 = vmatpush1.bf16.msra.mxu0 %v836
        %937 = vmatprep.subr.bf16.mxu0 0
        %938 = vmatpush1.bf16.msra.mxu0 %v835
        %939 = vmatprep.subr.bf16.mxu0 0
        %940 = vmatpush2.bf16.msra.mxu0 0
        %941 = vmatprep.subr.bf16.mxu0 0
        %942 = vmatpush2.bf16.msra.mxu0 0
        %943 = vmatprep.subr.bf16.mxu0 0
        %944 = vmatpush2.bf16.msra.mxu0 0
        %945 = vmatprep.subr.bf16.mxu0 0
        %946 = vmatpush2.bf16.msra.mxu0 0
        %947 = vmatprep.subr.bf16.mxu0 0
        %948 = vmatpush2.bf16.msra.mxu0 0
        %949 = vmatprep.subr.bf16.mxu0 0
        %950 = vmatpush2.bf16.msra.mxu0 0
        %951 = vmatprep.subr.bf16.mxu0 0
        %952 = vmatpush2.bf16.msra.mxu0 0
        %953 = vmatprep.subr.bf16.mxu0 0
        %954 = vmatpush2.bf16.msra.mxu0 0
        %955 = vmatprep.mubr.bf16.mxu0 0
        %956 = vmatmul.mubr.bf16.gmra.mxu0 %v915
        %v957 = vpop.f32.mrf.mxu0
        %v958 = vadd.f32 %v862, %v957
        %v959 = vpop.f32.mrf.mxu0
        %v960 = vpop.f32.mrf.mxu0
        %v961 = vadd.f32 %v867, %v960
        %v962 = vpop.f32.mrf.mxu0
        %963 = vmatprep.mubr.bf16.mxu0 0
        %964 = vmatmul.mubr.bf16.gmra.mxu0 %v916
        %v965 = vpop.f32.mrf.mxu0
        %v966 = vadd.f32 %v872, %v965
        %v967 = vpop.f32.mrf.mxu0
        %v968 = vpop.f32.mrf.mxu0
        %v969 = vadd.f32 %v877, %v968
        %v970 = vpop.f32.mrf.mxu0
        %971 = vmatprep.mubr.bf16.mxu0 0
        %972 = vmatmul.mubr.bf16.gmra.mxu0 %v917
        %v973 = vpop.f32.mrf.mxu0
        %v974 = vadd.f32 %v882, %v973
        %v975 = vpop.f32.mrf.mxu0
        %v976 = vpop.f32.mrf.mxu0
        %v977 = vadd.f32 %v887, %v976
        %v978 = vpop.f32.mrf.mxu0
        %979 = vmatprep.mubr.bf16.mxu0 0
        %980 = vmatmul.mubr.bf16.gmra.mxu0 %v918
        %v981 = vpop.f32.mrf.mxu0
        %v982 = vadd.f32 %v892, %v981
        %v983 = vpop.f32.mrf.mxu0
        %v984 = vpop.f32.mrf.mxu0
        %v985 = vadd.f32 %v897, %v984
        %v986 = vpop.f32.mrf.mxu0
        %987 = vdwg.mxu0
        %v988 = vmul.f32 %v958, 0.5
        %v989 = vmul.f32 %v961, 0.5
        %v990 = vmul.f32 %v966, 0.5
        %v991 = vmul.f32 %v969, 0.5
        %v992 = vmul.f32 %v974, 0.5
        %v993 = vmul.f32 %v977, 0.5
        %v994 = vmul.f32 %v982, 0.5
        %v995 = vmul.f32 %v985, 0.5
        %v996 = vtanh.pop %v988
        %v997 = vtanh.pop %v989
        %v998 = vtanh.pop %v990
        %v999 = vtanh.pop %v991
        %v1000 = vtanh.pop %v992
        %v1001 = vtanh.pop %v993
        %v1002 = vtanh.pop %v994
        %v1003 = vtanh.pop %v995
        %v1004 = vadd.f32 %v996, 1.0
        %v1005 = vadd.f32 %v997, 1.0
        %v1006 = vadd.f32 %v998, 1.0
        %v1007 = vadd.f32 %v999, 1.0
        %v1008 = vadd.f32 %v1000, 1.0
        %v1009 = vadd.f32 %v1001, 1.0
        %v1010 = vadd.f32 %v1002, 1.0
        %v1011 = vadd.f32 %v1003, 1.0
        %v1012 = vmul.f32 %v1004, 0.5
        %v1013 = vmul.f32 %v1005, 0.5
        %v1014 = vmul.f32 %v1006, 0.5
        %v1015 = vmul.f32 %v1007, 0.5
        %v1016 = vmul.f32 %v1008, 0.5
        %v1017 = vmul.f32 %v1009, 0.5
        %v1018 = vmul.f32 %v1010, 0.5
        %v1019 = vmul.f32 %v1011, 0.5
        %v1020 = vmul.f32 %v958, %v1012
        %v1021 = vmul.f32 %v961, %v1013
        %v1022 = vmul.f32 %v966, %v1014
        %v1023 = vmul.f32 %v969, %v1015
        %v1024 = vmul.f32 %v974, %v1016
        %v1025 = vmul.f32 %v977, %v1017
        %v1026 = vmul.f32 %v982, %v1018
        %v1027 = vmul.f32 %v985, %v1019
        %v1028 = vpack.c.bf16 %v1021, %v1020
        %v1029 = vpack.c.bf16 %v1023, %v1022
        %v1030 = vpack.c.bf16 %v1025, %v1024
        %v1031 = vpack.c.bf16 %v1027, %v1026
        %v1032 = vld [vmem:[%s4] sm:$0xf]
        %v1033 = vld [vmem:[%s4 + $0x4] sm:$0xf]
        %v1034 = vld [vmem:[%s4 + $0x8] sm:$0xf]
        %v1035 = vld [vmem:[%s4 + $0xc] sm:$0xf]
        %v1036 = vld [vmem:[%s4 + $0x10] sm:$0xf]
        %v1037 = vld [vmem:[%s4 + $0x14] sm:$0xf]
        %v1038 = vld [vmem:[%s4 + $0x18] sm:$0xf]
        %v1039 = vld [vmem:[%s4 + $0x1c] sm:$0xf]
        %v1040 = vld [vmem:[%s4 + $0x20] sm:$0xf]
        %v1041 = vld [vmem:[%s4 + $0x24] sm:$0xf]
        %v1042 = vld [vmem:[%s4 + $0x28] sm:$0xf]
        %v1043 = vld [vmem:[%s4 + $0x2c] sm:$0xf]
        %v1044 = vld [vmem:[%s4 + $0x30] sm:$0xf]
        %v1045 = vld [vmem:[%s4 + $0x34] sm:$0xf]
        %v1046 = vld [vmem:[%s4 + $0x38] sm:$0xf]
        %v1047 = vld [vmem:[%s4 + $0x3c] sm:$0xf]
        %v1048 = vld [vmem:[%s5] sm:$0xff]
        %v1049 = vld [vmem:[%s5 + $0x8] sm:$0xff]
        %v1050 = vld [vmem:[%s5 + $0x10] sm:$0xff]
        %v1051 = vld [vmem:[%s5 + $0x18] sm:$0xff]
        %v1052 = vld [vmem:[%s5 + $0x20] sm:$0xff]
        %v1053 = vld [vmem:[%s5 + $0x28] sm:$0xff]
        %v1054 = vld [vmem:[%s5 + $0x30] sm:$0xff]
        %v1055 = vld [vmem:[%s5 + $0x38] sm:$0xff]
        %v1056 = vld [vmem:[%s5 + $0x40] sm:$0xff]
        %v1057 = vld [vmem:[%s5 + $0x48] sm:$0xff]
        %v1058 = vld [vmem:[%s5 + $0x50] sm:$0xff]
        %v1059 = vld [vmem:[%s5 + $0x58] sm:$0xff]
        %v1060 = vld [vmem:[%s5 + $0x60] sm:$0xff]
        %v1061 = vld [vmem:[%s5 + $0x68] sm:$0xff]
        %v1062 = vld [vmem:[%s5 + $0x70] sm:$0xff]
        %v1063 = vld [vmem:[%s5 + $0x78] sm:$0xff]
        %1065 = vset.pattern.permute.xlu0 0
        %1066 = vperm.xlu0 %1065, %v1048
        %v1067 = vpop.permute.xlu0 %1066
        %1070 = vset.pattern.permute.xlu0 0
        %1071 = vperm.xlu0 %1070, %v1049
        %v1072 = vpop.permute.xlu0 %1071
        %1075 = vset.pattern.permute.xlu0 0
        %1076 = vperm.xlu0 %1075, %v1050
        %v1077 = vpop.permute.xlu0 %1076
        %1080 = vset.pattern.permute.xlu0 0
        %1081 = vperm.xlu0 %1080, %v1051
        %v1082 = vpop.permute.xlu0 %1081
        %1085 = vset.pattern.permute.xlu0 0
        %1086 = vperm.xlu0 %1085, %v1052
        %v1087 = vpop.permute.xlu0 %1086
        %1090 = vset.pattern.permute.xlu0 0
        %1091 = vperm.xlu0 %1090, %v1053
        %v1092 = vpop.permute.xlu0 %1091
        %1095 = vset.pattern.permute.xlu0 0
        %1096 = vperm.xlu0 %1095, %v1054
        %v1097 = vpop.permute.xlu0 %1096
        %1100 = vset.pattern.permute.xlu0 0
        %1101 = vperm.xlu0 %1100, %v1055
        %v1102 = vpop.permute.xlu0 %1101
        %1105 = vset.pattern.permute.xlu0 0
        %1106 = vperm.xlu0 %1105, %v1056
        %v1107 = vpop.permute.xlu0 %1106
        %1110 = vset.pattern.permute.xlu0 0
        %1111 = vperm.xlu0 %1110, %v1057
        %v1112 = vpop.permute.xlu0 %1111
        %1115 = vset.pattern.permute.xlu0 0
        %1116 = vperm.xlu0 %1115, %v1058
        %v1117 = vpop.permute.xlu0 %1116
        %1120 = vset.pattern.permute.xlu0 0
        %1121 = vperm.xlu0 %1120, %v1059
        %v1122 = vpop.permute.xlu0 %1121
        %1125 = vset.pattern.permute.xlu0 0
        %1126 = vperm.xlu0 %1125, %v1060
        %v1127 = vpop.permute.xlu0 %1126
        %1130 = vset.pattern.permute.xlu0 0
        %1131 = vperm.xlu0 %1130, %v1061
        %v1132 = vpop.permute.xlu0 %1131
        %1135 = vset.pattern.permute.xlu0 0
        %1136 = vperm.xlu0 %1135, %v1062
        %v1137 = vpop.permute.xlu0 %1136
        %1140 = vset.pattern.permute.xlu0 0
        %1141 = vperm.xlu0 %1140, %v1063
        %v1142 = vpop.permute.xlu0 %1141
        %v1160 = vunpack.c.l.b16 %v1032
        %v1161 = vunpack.c.l.b16 %v1033
        %v1162 = vunpack.c.l.b16 %v1034
        %v1163 = vunpack.c.l.b16 %v1035
        %v1164 = vunpack.c.l.b16 %v1036
        %v1165 = vunpack.c.l.b16 %v1037
        %v1166 = vunpack.c.l.b16 %v1038
        %v1167 = vunpack.c.l.b16 %v1039
        %v1168 = vunpack.c.l.b16 %v1040
        %v1169 = vunpack.c.l.b16 %v1041
        %v1170 = vunpack.c.l.b16 %v1042
        %v1171 = vunpack.c.l.b16 %v1043
        %v1172 = vunpack.c.l.b16 %v1044
        %v1173 = vunpack.c.l.b16 %v1045
        %v1174 = vunpack.c.l.b16 %v1046
        %v1175 = vunpack.c.l.b16 %v1047
        %v1176 = vpack.c.b16 %v1161, %v1160
        %v1177 = vpack.c.b16 %v1163, %v1162
        %v1178 = vpack.c.b16 %v1165, %v1164
        %v1179 = vpack.c.b16 %v1167, %v1166
        %v1180 = vpack.c.b16 %v1169, %v1168
        %v1181 = vpack.c.b16 %v1171, %v1170
        %v1182 = vpack.c.b16 %v1173, %v1172
        %v1183 = vpack.c.b16 %v1175, %v1174
        %vm1184 = vcmask 523264
        %v1186 = vsel %vm1184, %v1176, 0
        %v1189 = vsel %vm1184, %v1177, 0
        %v1192 = vsel %vm1184, %v1178, 0
        %v1195 = vsel %vm1184, %v1179, 0
        %v1198 = vsel %vm1184, %v1180, 0
        %v1201 = vsel %vm1184, %v1181, 0
        %v1204 = vsel %vm1184, %v1182, 0
        %v1207 = vsel %vm1184, %v1183, 0
        %1209 = vmatprep.subr.bf16.mxu0 0
        %1210 = vmatpush1.bf16.msra.mxu0 0
        %1211 = vmatprep.subr.bf16.mxu0 0
        %1212 = vmatpush1.bf16.msra.mxu0 0
        %1213 = vmatprep.subr.bf16.mxu0 0
        %1214 = vmatpush1.bf16.msra.mxu0 0
        %1215 = vmatprep.subr.bf16.mxu0 0
        %1216 = vmatpush1.bf16.msra.mxu0 0
        %1217 = vmatprep.subr.bf16.mxu0 0
        %1218 = vmatpush1.bf16.msra.mxu0 %v1031
        %1219 = vmatprep.subr.bf16.mxu0 0
        %1220 = vmatpush1.bf16.msra.mxu0 %v1030
        %1221 = vmatprep.subr.bf16.mxu0 0
        %1222 = vmatpush1.bf16.msra.mxu0 %v1029
        %1223 = vmatprep.subr.bf16.mxu0 0
        %1224 = vmatpush1.bf16.msra.mxu0 %v1028
        %1225 = vmatprep.subr.bf16.mxu0 0
        %1226 = vmatpush2.bf16.msra.mxu0 0
        %1227 = vmatprep.subr.bf16.mxu0 0
        %1228 = vmatpush2.bf16.msra.mxu0 0
        %1229 = vmatprep.subr.bf16.mxu0 0
        %1230 = vmatpush2.bf16.msra.mxu0 0
        %1231 = vmatprep.subr.bf16.mxu0 0
        %1232 = vmatpush2.bf16.msra.mxu0 0
        %1233 = vmatprep.subr.bf16.mxu0 0
        %1234 = vmatpush2.bf16.msra.mxu0 0
        %1235 = vmatprep.subr.bf16.mxu0 0
        %1236 = vmatpush2.bf16.msra.mxu0 0
        %1237 = vmatprep.subr.bf16.mxu0 0
        %1238 = vmatpush2.bf16.msra.mxu0 0
        %1239 = vmatprep.subr.bf16.mxu0 0
        %1240 = vmatpush2.bf16.msra.mxu0 0
        %1241 = vmatprep.mubr.bf16.mxu0 0
        %1242 = vmatmul.mubr.bf16.gmra.mxu0 %v1186
        %v1243 = vpop.f32.mrf.mxu0
        %v1244 = vadd.f32 %v1067, %v1243
        %v1245 = vpop.f32.mrf.mxu0
        %v1246 = vpop.f32.mrf.mxu0
        %v1247 = vadd.f32 %v1072, %v1246
        %v1248 = vpop.f32.mrf.mxu0
        %1249 = vmatprep.mubr.bf16.mxu0 0
        %1250 = vmatmul.mubr.bf16.gmra.mxu0 %v1189
        %v1251 = vpop.f32.mrf.mxu0
        %v1252 = vadd.f32 %v1077, %v1251
        %v1253 = vpop.f32.mrf.mxu0
        %v1254 = vpop.f32.mrf.mxu0
        %v1255 = vadd.f32 %v1082, %v1254
        %v1256 = vpop.f32.mrf.mxu0
        %1257 = vmatprep.mubr.bf16.mxu0 0
        %1258 = vmatmul.mubr.bf16.gmra.mxu0 %v1192
        %v1259 = vpop.f32.mrf.mxu0
        %v1260 = vadd.f32 %v1087, %v1259
        %v1261 = vpop.f32.mrf.mxu0
        %v1262 = vpop.f32.mrf.mxu0
        %v1263 = vadd.f32 %v1092, %v1262
        %v1264 = vpop.f32.mrf.mxu0
        %1265 = vmatprep.mubr.bf16.mxu0 0
        %1266 = vmatmul.mubr.bf16.gmra.mxu0 %v1195
        %v1267 = vpop.f32.mrf.mxu0
        %v1268 = vadd.f32 %v1097, %v1267
        %v1269 = vpop.f32.mrf.mxu0
        %v1270 = vpop.f32.mrf.mxu0
        %v1271 = vadd.f32 %v1102, %v1270
        %v1272 = vpop.f32.mrf.mxu0
        %1273 = vmatprep.mubr.bf16.mxu0 0
        %1274 = vmatmul.mubr.bf16.gmra.mxu0 %v1198
        %v1275 = vpop.f32.mrf.mxu0
        %v1276 = vadd.f32 %v1107, %v1275
        %v1277 = vpop.f32.mrf.mxu0
        %v1278 = vpop.f32.mrf.mxu0
        %v1279 = vadd.f32 %v1112, %v1278
        %v1280 = vpop.f32.mrf.mxu0
        %1281 = vmatprep.mubr.bf16.mxu0 0
        %1282 = vmatmul.mubr.bf16.gmra.mxu0 %v1201
        %v1283 = vpop.f32.mrf.mxu0
        %v1284 = vadd.f32 %v1117, %v1283
        %v1285 = vpop.f32.mrf.mxu0
        %v1286 = vpop.f32.mrf.mxu0
        %v1287 = vadd.f32 %v1122, %v1286
        %v1288 = vpop.f32.mrf.mxu0
        %1289 = vmatprep.mubr.bf16.mxu0 0
        %1290 = vmatmul.mubr.bf16.gmra.mxu0 %v1204
        %v1291 = vpop.f32.mrf.mxu0
        %v1292 = vadd.f32 %v1127, %v1291
        %v1293 = vpop.f32.mrf.mxu0
        %v1294 = vpop.f32.mrf.mxu0
        %v1295 = vadd.f32 %v1132, %v1294
        %v1296 = vpop.f32.mrf.mxu0
        %1297 = vmatprep.mubr.bf16.mxu0 0
        %1298 = vmatmul.mubr.bf16.gmra.mxu0 %v1207
        %v1299 = vpop.f32.mrf.mxu0
        %v1300 = vadd.f32 %v1137, %v1299
        %v1301 = vpop.f32.mrf.mxu0
        %v1302 = vpop.f32.mrf.mxu0
        %v1303 = vadd.f32 %v1142, %v1302
        %v1304 = vpop.f32.mrf.mxu0
        %1305 = vdwg.mxu0
        %v1306 = vmul.f32 %v1244, 0.5
        %v1307 = vmul.f32 %v1247, 0.5
        %v1308 = vmul.f32 %v1252, 0.5
        %v1309 = vmul.f32 %v1255, 0.5
        %v1310 = vmul.f32 %v1260, 0.5
        %v1311 = vmul.f32 %v1263, 0.5
        %v1312 = vmul.f32 %v1268, 0.5
        %v1313 = vmul.f32 %v1271, 0.5
        %v1314 = vmul.f32 %v1276, 0.5
        %v1315 = vmul.f32 %v1279, 0.5
        %v1316 = vmul.f32 %v1284, 0.5
        %v1317 = vmul.f32 %v1287, 0.5
        %v1318 = vmul.f32 %v1292, 0.5
        %v1319 = vmul.f32 %v1295, 0.5
        %v1320 = vmul.f32 %v1300, 0.5
        %v1321 = vmul.f32 %v1303, 0.5
        %v1322 = vtanh.pop %v1306
        %v1323 = vtanh.pop %v1307
        %v1324 = vtanh.pop %v1308
        %v1325 = vtanh.pop %v1309
        %v1326 = vtanh.pop %v1310
        %v1327 = vtanh.pop %v1311
        %v1328 = vtanh.pop %v1312
        %v1329 = vtanh.pop %v1313
        %v1330 = vtanh.pop %v1314
        %v1331 = vtanh.pop %v1315
        %v1332 = vtanh.pop %v1316
        %v1333 = vtanh.pop %v1317
        %v1334 = vtanh.pop %v1318
        %v1335 = vtanh.pop %v1319
        %v1336 = vtanh.pop %v1320
        %v1337 = vtanh.pop %v1321
        %v1338 = vadd.f32 %v1322, 1.0
        %v1339 = vadd.f32 %v1323, 1.0
        %v1340 = vadd.f32 %v1324, 1.0
        %v1341 = vadd.f32 %v1325, 1.0
        %v1342 = vadd.f32 %v1326, 1.0
        %v1343 = vadd.f32 %v1327, 1.0
        %v1344 = vadd.f32 %v1328, 1.0
        %v1345 = vadd.f32 %v1329, 1.0
        %v1346 = vadd.f32 %v1330, 1.0
        %v1347 = vadd.f32 %v1331, 1.0
        %v1348 = vadd.f32 %v1332, 1.0
        %v1349 = vadd.f32 %v1333, 1.0
        %v1350 = vadd.f32 %v1334, 1.0
        %v1351 = vadd.f32 %v1335, 1.0
        %v1352 = vadd.f32 %v1336, 1.0
        %v1353 = vadd.f32 %v1337, 1.0
        %v1354 = vmul.f32 %v1338, 0.5
        %v1355 = vmul.f32 %v1339, 0.5
        %v1356 = vmul.f32 %v1340, 0.5
        %v1357 = vmul.f32 %v1341, 0.5
        %v1358 = vmul.f32 %v1342, 0.5
        %v1359 = vmul.f32 %v1343, 0.5
        %v1360 = vmul.f32 %v1344, 0.5
        %v1361 = vmul.f32 %v1345, 0.5
        %v1362 = vmul.f32 %v1346, 0.5
        %v1363 = vmul.f32 %v1347, 0.5
        %v1364 = vmul.f32 %v1348, 0.5
        %v1365 = vmul.f32 %v1349, 0.5
        %v1366 = vmul.f32 %v1350, 0.5
        %v1367 = vmul.f32 %v1351, 0.5
        %v1368 = vmul.f32 %v1352, 0.5
        %v1369 = vmul.f32 %v1353, 0.5
        %v1370 = vmul.f32 %v1244, %v1354
        %v1371 = vmul.f32 %v1247, %v1355
        %v1372 = vmul.f32 %v1252, %v1356
        %v1373 = vmul.f32 %v1255, %v1357
        %v1374 = vmul.f32 %v1260, %v1358
        %v1375 = vmul.f32 %v1263, %v1359
        %v1376 = vmul.f32 %v1268, %v1360
        %v1377 = vmul.f32 %v1271, %v1361
        %v1378 = vmul.f32 %v1276, %v1362
        %v1379 = vmul.f32 %v1279, %v1363
        %v1380 = vmul.f32 %v1284, %v1364
        %v1381 = vmul.f32 %v1287, %v1365
        %v1382 = vmul.f32 %v1292, %v1366
        %v1383 = vmul.f32 %v1295, %v1367
        %v1384 = vmul.f32 %v1300, %v1368
        %v1385 = vmul.f32 %v1303, %v1369
        %v1386 = vpack.c.bf16 %v1371, %v1370
        %v1387 = vpack.c.bf16 %v1373, %v1372
        %v1388 = vpack.c.bf16 %v1375, %v1374
        %v1389 = vpack.c.bf16 %v1377, %v1376
        %v1390 = vpack.c.bf16 %v1379, %v1378
        %v1391 = vpack.c.bf16 %v1381, %v1380
        %v1392 = vpack.c.bf16 %v1383, %v1382
        %v1393 = vpack.c.bf16 %v1385, %v1384
        %v1394 = vld [vmem:[#allocation6] sm:$0xf]
        %v1395 = vld [vmem:[#allocation6 + $0x4] sm:$0xf]
        %v1396 = vld [vmem:[#allocation6 + $0x8] sm:$0xf]
        %v1397 = vld [vmem:[#allocation6 + $0xc] sm:$0xf]
        %v1398 = vld [vmem:[#allocation6 + $0x10] sm:$0xf]
        %v1399 = vld [vmem:[#allocation6 + $0x14] sm:$0xf]
        %v1400 = vld [vmem:[#allocation6 + $0x18] sm:$0xf]
        %v1401 = vld [vmem:[#allocation6 + $0x1c] sm:$0xf]
        %v1402 = vld [vmem:[%s7] sm:$0xff]
        %v1403 = vld [vmem:[%s7 + $0x8] sm:$0xff]
        %v1404 = vld [vmem:[%s7 + $0x10] sm:$0xff]
        %v1405 = vld [vmem:[%s7 + $0x18] sm:$0xff]
        %v1406 = vld [vmem:[%s7 + $0x20] sm:$0xff]
        %v1407 = vld [vmem:[%s7 + $0x28] sm:$0xff]
        %v1408 = vld [vmem:[%s7 + $0x30] sm:$0xff]
        %v1409 = vld [vmem:[%s7 + $0x38] sm:$0xff]
        %1411 = vset.pattern.permute.xlu0 0
        %1412 = vperm.xlu0 %1411, %v1402
        %v1413 = vpop.permute.xlu0 %1412
        %1416 = vset.pattern.permute.xlu0 0
        %1417 = vperm.xlu0 %1416, %v1403
        %v1418 = vpop.permute.xlu0 %1417
        %1421 = vset.pattern.permute.xlu0 0
        %1422 = vperm.xlu0 %1421, %v1404
        %v1423 = vpop.permute.xlu0 %1422
        %1426 = vset.pattern.permute.xlu0 0
        %1427 = vperm.xlu0 %1426, %v1405
        %v1428 = vpop.permute.xlu0 %1427
        %1431 = vset.pattern.permute.xlu0 0
        %1432 = vperm.xlu0 %1431, %v1406
        %v1433 = vpop.permute.xlu0 %1432
        %1436 = vset.pattern.permute.xlu0 0
        %1437 = vperm.xlu0 %1436, %v1407
        %v1438 = vpop.permute.xlu0 %1437
        %1441 = vset.pattern.permute.xlu0 0
        %1442 = vperm.xlu0 %1441, %v1408
        %v1443 = vpop.permute.xlu0 %1442
        %1446 = vset.pattern.permute.xlu0 0
        %1447 = vperm.xlu0 %1446, %v1409
        %v1448 = vpop.permute.xlu0 %1447
        %v1458 = vunpack.c.l.b16 %v1394
        %v1459 = vunpack.c.l.b16 %v1395
        %v1460 = vunpack.c.l.b16 %v1396
        %v1461 = vunpack.c.l.b16 %v1397
        %v1462 = vunpack.c.l.b16 %v1398
        %v1463 = vunpack.c.l.b16 %v1399
        %v1464 = vunpack.c.l.b16 %v1400
        %v1465 = vunpack.c.l.b16 %v1401
        %v1466 = vpack.c.b16 %v1459, %v1458
        %v1467 = vpack.c.b16 %v1461, %v1460
        %v1468 = vpack.c.b16 %v1463, %v1462
        %v1469 = vpack.c.b16 %v1465, %v1464
        %1474 = vmatprep.subr.bf16.mxu0 0
        %1475 = vmatpush1.bf16.msra.mxu0 %v1393
        %1476 = vmatprep.subr.bf16.mxu0 0
        %1477 = vmatpush1.bf16.msra.mxu0 %v1392
        %1478 = vmatprep.subr.bf16.mxu0 0
        %1479 = vmatpush1.bf16.msra.mxu0 %v1391
        %1480 = vmatprep.subr.bf16.mxu0 0
        %1481 = vmatpush1.bf16.msra.mxu0 %v1390
        %1482 = vmatprep.subr.bf16.mxu0 0
        %1483 = vmatpush1.bf16.msra.mxu0 %v1389
        %1484 = vmatprep.subr.bf16.mxu0 0
        %1485 = vmatpush1.bf16.msra.mxu0 %v1388
        %1486 = vmatprep.subr.bf16.mxu0 0
        %1487 = vmatpush1.bf16.msra.mxu0 %v1387
        %1488 = vmatprep.subr.bf16.mxu0 0
        %1489 = vmatpush1.bf16.msra.mxu0 %v1386
        %1490 = vmatprep.subr.bf16.mxu0 0
        %1491 = vmatpush2.bf16.msra.mxu0 0
        %1492 = vmatprep.subr.bf16.mxu0 0
        %1493 = vmatpush2.bf16.msra.mxu0 0
        %1494 = vmatprep.subr.bf16.mxu0 0
        %1495 = vmatpush2.bf16.msra.mxu0 0
        %1496 = vmatprep.subr.bf16.mxu0 0
        %1497 = vmatpush2.bf16.msra.mxu0 0
        %1498 = vmatprep.subr.bf16.mxu0 0
        %1499 = vmatpush2.bf16.msra.mxu0 0
        %1500 = vmatprep.subr.bf16.mxu0 0
        %1501 = vmatpush2.bf16.msra.mxu0 0
        %1502 = vmatprep.subr.bf16.mxu0 0
        %1503 = vmatpush2.bf16.msra.mxu0 0
        %1504 = vmatprep.subr.bf16.mxu0 0
        %1505 = vmatpush2.bf16.msra.mxu0 0
        %1506 = vmatprep.mubr.bf16.mxu0 0
        %1507 = vmatmul.mubr.bf16.gmra.mxu0 %v1466
        %v1508 = vpop.f32.mrf.mxu0
        %v1509 = vadd.f32 %v1413, %v1508
        %v1510 = vpop.f32.mrf.mxu0
        %v1511 = vpop.f32.mrf.mxu0
        %v1512 = vadd.f32 %v1418, %v1511
        %v1513 = vpop.f32.mrf.mxu0
        %1514 = vmatprep.mubr.bf16.mxu0 0
        %1515 = vmatmul.mubr.bf16.gmra.mxu0 %v1467
        %v1516 = vpop.f32.mrf.mxu0
        %v1517 = vadd.f32 %v1423, %v1516
        %v1518 = vpop.f32.mrf.mxu0
        %v1519 = vpop.f32.mrf.mxu0
        %v1520 = vadd.f32 %v1428, %v1519
        %v1521 = vpop.f32.mrf.mxu0
        %1522 = vmatprep.mubr.bf16.mxu0 0
        %1523 = vmatmul.mubr.bf16.gmra.mxu0 %v1468
        %v1524 = vpop.f32.mrf.mxu0
        %v1525 = vadd.f32 %v1433, %v1524
        %v1526 = vpop.f32.mrf.mxu0
        %v1527 = vpop.f32.mrf.mxu0
        %v1528 = vadd.f32 %v1438, %v1527
        %v1529 = vpop.f32.mrf.mxu0
        %1530 = vmatprep.mubr.bf16.mxu0 0
        %1531 = vmatmul.mubr.bf16.gmra.mxu0 %v1469
        %v1532 = vpop.f32.mrf.mxu0
        %v1533 = vadd.f32 %v1443, %v1532
        %v1534 = vpop.f32.mrf.mxu0
        %v1535 = vpop.f32.mrf.mxu0
        %v1536 = vadd.f32 %v1448, %v1535
        %v1537 = vpop.f32.mrf.mxu0
        %1538 = vdwg.mxu0
        %v1539 = vmul.f32 %v1509, 0.5
        %v1540 = vmul.f32 %v1512, 0.5
        %v1541 = vmul.f32 %v1517, 0.5
        %v1542 = vmul.f32 %v1520, 0.5
        %v1543 = vmul.f32 %v1525, 0.5
        %v1544 = vmul.f32 %v1528, 0.5
        %v1545 = vmul.f32 %v1533, 0.5
        %v1546 = vmul.f32 %v1536, 0.5
        %v1547 = vtanh.pop %v1539
        %v1548 = vtanh.pop %v1540
        %v1549 = vtanh.pop %v1541
        %v1550 = vtanh.pop %v1542
        %v1551 = vtanh.pop %v1543
        %v1552 = vtanh.pop %v1544
        %v1553 = vtanh.pop %v1545
        %v1554 = vtanh.pop %v1546
        %v1555 = vadd.f32 %v1547, 1.0
        %v1556 = vadd.f32 %v1548, 1.0
        %v1557 = vadd.f32 %v1549, 1.0
        %v1558 = vadd.f32 %v1550, 1.0
        %v1559 = vadd.f32 %v1551, 1.0
        %v1560 = vadd.f32 %v1552, 1.0
        %v1561 = vadd.f32 %v1553, 1.0
        %v1562 = vadd.f32 %v1554, 1.0
        %v1563 = vmul.f32 %v1555, 0.5
        %v1564 = vmul.f32 %v1556, 0.5
        %v1565 = vmul.f32 %v1557, 0.5
        %v1566 = vmul.f32 %v1558, 0.5
        %v1567 = vmul.f32 %v1559, 0.5
        %v1568 = vmul.f32 %v1560, 0.5
        %v1569 = vmul.f32 %v1561, 0.5
        %v1570 = vmul.f32 %v1562, 0.5
        %v1571 = vmul.f32 %v1509, %v1563
        %v1572 = vmul.f32 %v1512, %v1564
        %v1573 = vmul.f32 %v1517, %v1565
        %v1574 = vmul.f32 %v1520, %v1566
        %v1575 = vmul.f32 %v1525, %v1567
        %v1576 = vmul.f32 %v1528, %v1568
        %v1577 = vmul.f32 %v1533, %v1569
        %v1578 = vmul.f32 %v1536, %v1570
        %v1579 = vpack.c.bf16 %v1572, %v1571
        %v1580 = vpack.c.bf16 %v1574, %v1573
        %v1581 = vpack.c.bf16 %v1576, %v1575
        %v1582 = vpack.c.bf16 %v1578, %v1577
        %v1583 = vld [vmem:[%s8] sm:$0xf]
        %v1584 = vld [vmem:[%s8 + $0x4] sm:$0xf]
        %v1585 = vld [vmem:[%s8 + $0x8] sm:$0xf]
        %v1586 = vld [vmem:[%s8 + $0xc] sm:$0xf]
        %v1587 = vld [vmem:[%s8 + $0x10] sm:$0xf]
        %v1588 = vld [vmem:[%s8 + $0x14] sm:$0xf]
        %v1589 = vld [vmem:[%s8 + $0x18] sm:$0xf]
        %v1590 = vld [vmem:[%s8 + $0x1c] sm:$0xf]
        %v1591 = vld [vmem:[%s8 + $0x20] sm:$0xf]
        %v1592 = vld [vmem:[%s8 + $0x24] sm:$0xf]
        %v1593 = vld [vmem:[%s8 + $0x28] sm:$0xf]
        %v1594 = vld [vmem:[%s8 + $0x2c] sm:$0xf]
        %v1595 = vld [vmem:[%s8 + $0x30] sm:$0xf]
        %v1596 = vld [vmem:[%s8 + $0x34] sm:$0xf]
        %v1597 = vld [vmem:[%s8 + $0x38] sm:$0xf]
        %v1598 = vld [vmem:[%s8 + $0x3c] sm:$0xf]
        %v1599 = vld [vmem:[%s9] sm:$0xff]
        %v1600 = vld [vmem:[%s9 + $0x8] sm:$0xff]
        %v1601 = vld [vmem:[%s9 + $0x10] sm:$0xff]
        %v1602 = vld [vmem:[%s9 + $0x18] sm:$0xff]
        %v1603 = vld [vmem:[%s9 + $0x20] sm:$0xff]
        %v1604 = vld [vmem:[%s9 + $0x28] sm:$0xff]
        %v1605 = vld [vmem:[%s9 + $0x30] sm:$0xff]
        %v1606 = vld [vmem:[%s9 + $0x38] sm:$0xff]
        %v1607 = vld [vmem:[%s9 + $0x40] sm:$0xff]
        %v1608 = vld [vmem:[%s9 + $0x48] sm:$0xff]
        %v1609 = vld [vmem:[%s9 + $0x50] sm:$0xff]
        %v1610 = vld [vmem:[%s9 + $0x58] sm:$0xff]
        %v1611 = vld [vmem:[%s9 + $0x60] sm:$0xff]
        %v1612 = vld [vmem:[%s9 + $0x68] sm:$0xff]
        %v1613 = vld [vmem:[%s9 + $0x70] sm:$0xff]
        %v1614 = vld [vmem:[%s9 + $0x78] sm:$0xff]
        %1616 = vset.pattern.permute.xlu0 0
        %1617 = vperm.xlu0 %1616, %v1599
        %v1618 = vpop.permute.xlu0 %1617
        %1621 = vset.pattern.permute.xlu0 0
        %1622 = vperm.xlu0 %1621, %v1600
        %v1623 = vpop.permute.xlu0 %1622
        %1626 = vset.pattern.permute.xlu0 0
        %1627 = vperm.xlu0 %1626, %v1601
        %v1628 = vpop.permute.xlu0 %1627
        %1631 = vset.pattern.permute.xlu0 0
        %1632 = vperm.xlu0 %1631, %v1602
        %v1633 = vpop.permute.xlu0 %1632
        %1636 = vset.pattern.permute.xlu0 0
        %1637 = vperm.xlu0 %1636, %v1603
        %v1638 = vpop.permute.xlu0 %1637
        %1641 = vset.pattern.permute.xlu0 0
        %1642 = vperm.xlu0 %1641, %v1604
        %v1643 = vpop.permute.xlu0 %1642
        %1646 = vset.pattern.permute.xlu0 0
        %1647 = vperm.xlu0 %1646, %v1605
        %v1648 = vpop.permute.xlu0 %1647
        %1651 = vset.pattern.permute.xlu0 0
        %1652 = vperm.xlu0 %1651, %v1606
        %v1653 = vpop.permute.xlu0 %1652
        %1656 = vset.pattern.permute.xlu0 0
        %1657 = vperm.xlu0 %1656, %v1607
        %v1658 = vpop.permute.xlu0 %1657
        %1661 = vset.pattern.permute.xlu0 0
        %1662 = vperm.xlu0 %1661, %v1608
        %v1663 = vpop.permute.xlu0 %1662
        %1666 = vset.pattern.permute.xlu0 0
        %1667 = vperm.xlu0 %1666, %v1609
        %v1668 = vpop.permute.xlu0 %1667
        %1671 = vset.pattern.permute.xlu0 0
        %1672 = vperm.xlu0 %1671, %v1610
        %v1673 = vpop.permute.xlu0 %1672
        %1676 = vset.pattern.permute.xlu0 0
        %1677 = vperm.xlu0 %1676, %v1611
        %v1678 = vpop.permute.xlu0 %1677
        %1681 = vset.pattern.permute.xlu0 0
        %1682 = vperm.xlu0 %1681, %v1612
        %v1683 = vpop.permute.xlu0 %1682
        %1686 = vset.pattern.permute.xlu0 0
        %1687 = vperm.xlu0 %1686, %v1613
        %v1688 = vpop.permute.xlu0 %1687
        %1691 = vset.pattern.permute.xlu0 0
        %1692 = vperm.xlu0 %1691, %v1614
        %v1693 = vpop.permute.xlu0 %1692
        %v1711 = vunpack.c.l.b16 %v1583
        %v1712 = vunpack.c.l.b16 %v1584
        %v1713 = vunpack.c.l.b16 %v1585
        %v1714 = vunpack.c.l.b16 %v1586
        %v1715 = vunpack.c.l.b16 %v1587
        %v1716 = vunpack.c.l.b16 %v1588
        %v1717 = vunpack.c.l.b16 %v1589
        %v1718 = vunpack.c.l.b16 %v1590
        %v1719 = vunpack.c.l.b16 %v1591
        %v1720 = vunpack.c.l.b16 %v1592
        %v1721 = vunpack.c.l.b16 %v1593
        %v1722 = vunpack.c.l.b16 %v1594
        %v1723 = vunpack.c.l.b16 %v1595
        %v1724 = vunpack.c.l.b16 %v1596
        %v1725 = vunpack.c.l.b16 %v1597
        %v1726 = vunpack.c.l.b16 %v1598
        %v1727 = vpack.c.b16 %v1712, %v1711
        %v1728 = vpack.c.b16 %v1714, %v1713
        %v1729 = vpack.c.b16 %v1716, %v1715
        %v1730 = vpack.c.b16 %v1718, %v1717
        %v1731 = vpack.c.b16 %v1720, %v1719
        %v1732 = vpack.c.b16 %v1722, %v1721
        %v1733 = vpack.c.b16 %v1724, %v1723
        %v1734 = vpack.c.b16 %v1726, %v1725
        %v1736 = vsel %vm1184, %v1727, 0
        %v1739 = vsel %vm1184, %v1728, 0
        %v1742 = vsel %vm1184, %v1729, 0
        %v1745 = vsel %vm1184, %v1730, 0
        %v1748 = vsel %vm1184, %v1731, 0
        %v1751 = vsel %vm1184, %v1732, 0
        %v1754 = vsel %vm1184, %v1733, 0
        %v1757 = vsel %vm1184, %v1734, 0
        %1759 = vmatprep.subr.bf16.mxu0 0
        %1760 = vmatpush1.bf16.msra.mxu0 0
        %1761 = vmatprep.subr.bf16.mxu0 0
        %1762 = vmatpush1.bf16.msra.mxu0 0
        %1763 = vmatprep.subr.bf16.mxu0 0
        %1764 = vmatpush1.bf16.msra.mxu0 0
        %1765 = vmatprep.subr.bf16.mxu0 0
        %1766 = vmatpush1.bf16.msra.mxu0 0
        %1767 = vmatprep.subr.bf16.mxu0 0
        %1768 = vmatpush1.bf16.msra.mxu0 %v1582
        %1769 = vmatprep.subr.bf16.mxu0 0
        %1770 = vmatpush1.bf16.msra.mxu0 %v1581
        %1771 = vmatprep.subr.bf16.mxu0 0
        %1772 = vmatpush1.bf16.msra.mxu0 %v1580
        %1773 = vmatprep.subr.bf16.mxu0 0
        %1774 = vmatpush1.bf16.msra.mxu0 %v1579
        %1775 = vmatprep.subr.bf16.mxu0 0
        %1776 = vmatpush2.bf16.msra.mxu0 0
        %1777 = vmatprep.subr.bf16.mxu0 0
        %1778 = vmatpush2.bf16.msra.mxu0 0
        %1779 = vmatprep.subr.bf16.mxu0 0
        %1780 = vmatpush2.bf16.msra.mxu0 0
        %1781 = vmatprep.subr.bf16.mxu0 0
        %1782 = vmatpush2.bf16.msra.mxu0 0
        %1783 = vmatprep.subr.bf16.mxu0 0
        %1784 = vmatpush2.bf16.msra.mxu0 0
        %1785 = vmatprep.subr.bf16.mxu0 0
        %1786 = vmatpush2.bf16.msra.mxu0 0
        %1787 = vmatprep.subr.bf16.mxu0 0
        %1788 = vmatpush2.bf16.msra.mxu0 0
        %1789 = vmatprep.subr.bf16.mxu0 0
        %1790 = vmatpush2.bf16.msra.mxu0 0
        %1791 = vmatprep.mubr.bf16.mxu0 0
        %1792 = vmatmul.mubr.bf16.gmra.mxu0 %v1736
        %v1793 = vpop.f32.mrf.mxu0
        %v1794 = vadd.f32 %v1618, %v1793
        %v1795 = vpop.f32.mrf.mxu0
        %v1796 = vpop.f32.mrf.mxu0
        %v1797 = vadd.f32 %v1623, %v1796
        %v1798 = vpop.f32.mrf.mxu0
        %1799 = vmatprep.mubr.bf16.mxu0 0
        %1800 = vmatmul.mubr.bf16.gmra.mxu0 %v1739
        %v1801 = vpop.f32.mrf.mxu0
        %v1802 = vadd.f32 %v1628, %v1801
        %v1803 = vpop.f32.mrf.mxu0
        %v1804 = vpop.f32.mrf.mxu0
        %v1805 = vadd.f32 %v1633, %v1804
        %v1806 = vpop.f32.mrf.mxu0
        %1807 = vmatprep.mubr.bf16.mxu0 0
        %1808 = vmatmul.mubr.bf16.gmra.mxu0 %v1742
        %v1809 = vpop.f32.mrf.mxu0
        %v1810 = vadd.f32 %v1638, %v1809
        %v1811 = vpop.f32.mrf.mxu0
        %v1812 = vpop.f32.mrf.mxu0
        %v1813 = vadd.f32 %v1643, %v1812
        %v1814 = vpop.f32.mrf.mxu0
        %1815 = vmatprep.mubr.bf16.mxu0 0
        %1816 = vmatmul.mubr.bf16.gmra.mxu0 %v1745
        %v1817 = vpop.f32.mrf.mxu0
        %v1818 = vadd.f32 %v1648, %v1817
        %v1819 = vpop.f32.mrf.mxu0
        %v1820 = vpop.f32.mrf.mxu0
        %v1821 = vadd.f32 %v1653, %v1820
        %v1822 = vpop.f32.mrf.mxu0
        %1823 = vmatprep.mubr.bf16.mxu0 0
        %1824 = vmatmul.mubr.bf16.gmra.mxu0 %v1748
        %v1825 = vpop.f32.mrf.mxu0
        %v1826 = vadd.f32 %v1658, %v1825
        %v1827 = vpop.f32.mrf.mxu0
        %v1828 = vpop.f32.mrf.mxu0
        %v1829 = vadd.f32 %v1663, %v1828
        %v1830 = vpop.f32.mrf.mxu0
        %1831 = vmatprep.mubr.bf16.mxu0 0
        %1832 = vmatmul.mubr.bf16.gmra.mxu0 %v1751
        %v1833 = vpop.f32.mrf.mxu0
        %v1834 = vadd.f32 %v1668, %v1833
        %v1835 = vpop.f32.mrf.mxu0
        %v1836 = vpop.f32.mrf.mxu0
        %v1837 = vadd.f32 %v1673, %v1836
        %v1838 = vpop.f32.mrf.mxu0
        %1839 = vmatprep.mubr.bf16.mxu0 0
        %1840 = vmatmul.mubr.bf16.gmra.mxu0 %v1754
        %v1841 = vpop.f32.mrf.mxu0
        %v1842 = vadd.f32 %v1678, %v1841
        %v1843 = vpop.f32.mrf.mxu0
        %v1844 = vpop.f32.mrf.mxu0
        %v1845 = vadd.f32 %v1683, %v1844
        %v1846 = vpop.f32.mrf.mxu0
        %1847 = vmatprep.mubr.bf16.mxu0 0
        %1848 = vmatmul.mubr.bf16.gmra.mxu0 %v1757
        %v1849 = vpop.f32.mrf.mxu0
        %v1850 = vadd.f32 %v1688, %v1849
        %v1851 = vpop.f32.mrf.mxu0
        %v1852 = vpop.f32.mrf.mxu0
        %v1853 = vadd.f32 %v1693, %v1852
        %v1854 = vpop.f32.mrf.mxu0
        %1855 = vdwg.mxu0
        %v1856 = vmul.f32 %v1794, 0.5
        %v1857 = vmul.f32 %v1797, 0.5
        %v1858 = vmul.f32 %v1802, 0.5
        %v1859 = vmul.f32 %v1805, 0.5
        %v1860 = vmul.f32 %v1810, 0.5
        %v1861 = vmul.f32 %v1813, 0.5
        %v1862 = vmul.f32 %v1818, 0.5
        %v1863 = vmul.f32 %v1821, 0.5
        %v1864 = vmul.f32 %v1826, 0.5
        %v1865 = vmul.f32 %v1829, 0.5
        %v1866 = vmul.f32 %v1834, 0.5
        %v1867 = vmul.f32 %v1837, 0.5
        %v1868 = vmul.f32 %v1842, 0.5
        %v1869 = vmul.f32 %v1845, 0.5
        %v1870 = vmul.f32 %v1850, 0.5
        %v1871 = vmul.f32 %v1853, 0.5
        %v1872 = vtanh.pop %v1856
        %v1873 = vtanh.pop %v1857
        %v1874 = vtanh.pop %v1858
        %v1875 = vtanh.pop %v1859
        %v1876 = vtanh.pop %v1860
        %v1877 = vtanh.pop %v1861
        %v1878 = vtanh.pop %v1862
        %v1879 = vtanh.pop %v1863
        %v1880 = vtanh.pop %v1864
        %v1881 = vtanh.pop %v1865
        %v1882 = vtanh.pop %v1866
        %v1883 = vtanh.pop %v1867
        %v1884 = vtanh.pop %v1868
        %v1885 = vtanh.pop %v1869
        %v1886 = vtanh.pop %v1870
        %v1887 = vtanh.pop %v1871
        %v1888 = vadd.f32 %v1872, 1.0
        %v1889 = vadd.f32 %v1873, 1.0
        %v1890 = vadd.f32 %v1874, 1.0
        %v1891 = vadd.f32 %v1875, 1.0
        %v1892 = vadd.f32 %v1876, 1.0
        %v1893 = vadd.f32 %v1877, 1.0
        %v1894 = vadd.f32 %v1878, 1.0
        %v1895 = vadd.f32 %v1879, 1.0
        %v1896 = vadd.f32 %v1880, 1.0
        %v1897 = vadd.f32 %v1881, 1.0
        %v1898 = vadd.f32 %v1882, 1.0
        %v1899 = vadd.f32 %v1883, 1.0
        %v1900 = vadd.f32 %v1884, 1.0
        %v1901 = vadd.f32 %v1885, 1.0
        %v1902 = vadd.f32 %v1886, 1.0
        %v1903 = vadd.f32 %v1887, 1.0
        %v1904 = vmul.f32 %v1888, 0.5
        %v1905 = vmul.f32 %v1889, 0.5
        %v1906 = vmul.f32 %v1890, 0.5
        %v1907 = vmul.f32 %v1891, 0.5
        %v1908 = vmul.f32 %v1892, 0.5
        %v1909 = vmul.f32 %v1893, 0.5
        %v1910 = vmul.f32 %v1894, 0.5
        %v1911 = vmul.f32 %v1895, 0.5
        %v1912 = vmul.f32 %v1896, 0.5
        %v1913 = vmul.f32 %v1897, 0.5
        %v1914 = vmul.f32 %v1898, 0.5
        %v1915 = vmul.f32 %v1899, 0.5
        %v1916 = vmul.f32 %v1900, 0.5
        %v1917 = vmul.f32 %v1901, 0.5
        %v1918 = vmul.f32 %v1902, 0.5
        %v1919 = vmul.f32 %v1903, 0.5
        %v1920 = vsub.f32 %v803, %v771
        %v1921 = vsub.f32 %v804, %v772
        %v1922 = vsub.f32 %v805, %v773
        %v1923 = vsub.f32 %v806, %v774
        %v1924 = vsub.f32 %v807, %v775
        %v1925 = vsub.f32 %v808, %v776
        %v1926 = vsub.f32 %v809, %v777
        %v1927 = vsub.f32 %v810, %v778
        %v1928 = vsub.f32 %v811, %v779
        %v1929 = vsub.f32 %v812, %v780
        %v1930 = vsub.f32 %v813, %v781
        %v1931 = vsub.f32 %v814, %v782
        %v1932 = vsub.f32 %v815, %v783
        %v1933 = vsub.f32 %v816, %v784
        %v1934 = vsub.f32 %v817, %v785
        %v1935 = vsub.f32 %v818, %v786
        %v1936 = vmul.f32 %v1904, %v1920
        %v1937 = vmul.f32 %v1905, %v1921
        %v1938 = vmul.f32 %v1906, %v1922
        %v1939 = vmul.f32 %v1907, %v1923
        %v1940 = vmul.f32 %v1908, %v1924
        %v1941 = vmul.f32 %v1909, %v1925
        %v1942 = vmul.f32 %v1910, %v1926
        %v1943 = vmul.f32 %v1911, %v1927
        %v1944 = vmul.f32 %v1912, %v1928
        %v1945 = vmul.f32 %v1913, %v1929
        %v1946 = vmul.f32 %v1914, %v1930
        %v1947 = vmul.f32 %v1915, %v1931
        %v1948 = vmul.f32 %v1916, %v1932
        %v1949 = vmul.f32 %v1917, %v1933
        %v1950 = vmul.f32 %v1918, %v1934
        %v1951 = vmul.f32 %v1919, %v1935
        %v1952 = vadd.f32 %v771, %v1936
        %v1953 = vadd.f32 %v772, %v1937
        %v1954 = vadd.f32 %v773, %v1938
        %v1955 = vadd.f32 %v774, %v1939
        %v1956 = vadd.f32 %v775, %v1940
        %v1957 = vadd.f32 %v776, %v1941
        %v1958 = vadd.f32 %v777, %v1942
        %v1959 = vadd.f32 %v778, %v1943
        %v1960 = vadd.f32 %v779, %v1944
        %v1961 = vadd.f32 %v780, %v1945
        %v1962 = vadd.f32 %v781, %v1946
        %v1963 = vadd.f32 %v782, %v1947
        %v1964 = vadd.f32 %v783, %v1948
        %v1965 = vadd.f32 %v784, %v1949
        %v1966 = vadd.f32 %v785, %v1950
        %v1967 = vadd.f32 %v786, %v1951
        %v1968 = vpack.c.bf16 %v1953, %v1952
        %v1969 = vpack.c.bf16 %v1955, %v1954
        %v1970 = vpack.c.bf16 %v1957, %v1956
        %v1971 = vpack.c.bf16 %v1959, %v1958
        %v1972 = vpack.c.bf16 %v1961, %v1960
        %v1973 = vpack.c.bf16 %v1963, %v1962
        %v1974 = vpack.c.bf16 %v1965, %v1964
        %v1975 = vpack.c.bf16 %v1967, %v1966
        %v1976 = vld [vmem:[#allocation8] sm:$0xf]
        %v1977 = vld [vmem:[#allocation8 + $0x4] sm:$0xf]
        %v1978 = vld [vmem:[#allocation8 + $0x8] sm:$0xf]
        %v1979 = vld [vmem:[#allocation8 + $0xc] sm:$0xf]
        %v1980 = vld [vmem:[#allocation8 + $0x10] sm:$0xf]
        %v1981 = vld [vmem:[#allocation8 + $0x14] sm:$0xf]
        %v1982 = vld [vmem:[#allocation8 + $0x18] sm:$0xf]
        %v1983 = vld [vmem:[#allocation8 + $0x1c] sm:$0xf]
        %v1984 = vld [vmem:[%s11] sm:$0xff]
        %v1985 = vld [vmem:[%s11 + $0x8] sm:$0xff]
        %v1986 = vld [vmem:[%s11 + $0x10] sm:$0xff]
        %v1987 = vld [vmem:[%s11 + $0x18] sm:$0xff]
        %v1988 = vld [vmem:[%s11 + $0x20] sm:$0xff]
        %v1989 = vld [vmem:[%s11 + $0x28] sm:$0xff]
        %v1990 = vld [vmem:[%s11 + $0x30] sm:$0xff]
        %v1991 = vld [vmem:[%s11 + $0x38] sm:$0xff]
        %1993 = vset.pattern.permute.xlu0 0
        %1994 = vperm.xlu0 %1993, %v1984
        %v1995 = vpop.permute.xlu0 %1994
        %1998 = vset.pattern.permute.xlu0 0
        %1999 = vperm.xlu0 %1998, %v1985
        %v2000 = vpop.permute.xlu0 %1999
        %2003 = vset.pattern.permute.xlu0 0
        %2004 = vperm.xlu0 %2003, %v1986
        %v2005 = vpop.permute.xlu0 %2004
        %2008 = vset.pattern.permute.xlu0 0
        %2009 = vperm.xlu0 %2008, %v1987
        %v2010 = vpop.permute.xlu0 %2009
        %2013 = vset.pattern.permute.xlu0 0
        %2014 = vperm.xlu0 %2013, %v1988
        %v2015 = vpop.permute.xlu0 %2014
        %2018 = vset.pattern.permute.xlu0 0
        %2019 = vperm.xlu0 %2018, %v1989
        %v2020 = vpop.permute.xlu0 %2019
        %2023 = vset.pattern.permute.xlu0 0
        %2024 = vperm.xlu0 %2023, %v1990
        %v2025 = vpop.permute.xlu0 %2024
        %2028 = vset.pattern.permute.xlu0 0
        %2029 = vperm.xlu0 %2028, %v1991
        %v2030 = vpop.permute.xlu0 %2029
        %v2040 = vunpack.c.l.b16 %v1976
        %v2041 = vunpack.c.l.b16 %v1977
        %v2042 = vunpack.c.l.b16 %v1978
        %v2043 = vunpack.c.l.b16 %v1979
        %v2044 = vunpack.c.l.b16 %v1980
        %v2045 = vunpack.c.l.b16 %v1981
        %v2046 = vunpack.c.l.b16 %v1982
        %v2047 = vunpack.c.l.b16 %v1983
        %v2048 = vpack.c.b16 %v2041, %v2040
        %v2049 = vpack.c.b16 %v2043, %v2042
        %v2050 = vpack.c.b16 %v2045, %v2044
        %v2051 = vpack.c.b16 %v2047, %v2046
        %2056 = vmatprep.subr.bf16.mxu0 0
        %2057 = vmatpush1.bf16.msra.mxu0 %v1975
        %2058 = vmatprep.subr.bf16.mxu0 0
        %2059 = vmatpush1.bf16.msra.mxu0 %v1974
        %2060 = vmatprep.subr.bf16.mxu0 0
        %2061 = vmatpush1.bf16.msra.mxu0 %v1973
        %2062 = vmatprep.subr.bf16.mxu0 0
        %2063 = vmatpush1.bf16.msra.mxu0 %v1972
        %2064 = vmatprep.subr.bf16.mxu0 0
        %2065 = vmatpush1.bf16.msra.mxu0 %v1971
        %2066 = vmatprep.subr.bf16.mxu0 0
        %2067 = vmatpush1.bf16.msra.mxu0 %v1970
        %2068 = vmatprep.subr.bf16.mxu0 0
        %2069 = vmatpush1.bf16.msra.mxu0 %v1969
        %2070 = vmatprep.subr.bf16.mxu0 0
        %2071 = vmatpush1.bf16.msra.mxu0 %v1968
        %2072 = vmatprep.subr.bf16.mxu0 0
        %2073 = vmatpush2.bf16.msra.mxu0 0
        %2074 = vmatprep.subr.bf16.mxu0 0
        %2075 = vmatpush2.bf16.msra.mxu0 0
        %2076 = vmatprep.subr.bf16.mxu0 0
        %2077 = vmatpush2.bf16.msra.mxu0 0
        %2078 = vmatprep.subr.bf16.mxu0 0
        %2079 = vmatpush2.bf16.msra.mxu0 0
        %2080 = vmatprep.subr.bf16.mxu0 0
        %2081 = vmatpush2.bf16.msra.mxu0 0
        %2082 = vmatprep.subr.bf16.mxu0 0
        %2083 = vmatpush2.bf16.msra.mxu0 0
        %2084 = vmatprep.subr.bf16.mxu0 0
        %2085 = vmatpush2.bf16.msra.mxu0 0
        %2086 = vmatprep.subr.bf16.mxu0 0
        %2087 = vmatpush2.bf16.msra.mxu0 0
        %2088 = vmatprep.mubr.bf16.mxu0 0
        %2089 = vmatmul.mubr.bf16.gmra.mxu0 %v2048
        %v2090 = vpop.f32.mrf.mxu0
        %v2091 = vadd.f32 %v1995, %v2090
        %v2092 = vpop.f32.mrf.mxu0
        %v2093 = vpop.f32.mrf.mxu0
        %v2094 = vadd.f32 %v2000, %v2093
        %v2095 = vpop.f32.mrf.mxu0
        %2096 = vmatprep.mubr.bf16.mxu0 0
        %2097 = vmatmul.mubr.bf16.gmra.mxu0 %v2049
        %v2098 = vpop.f32.mrf.mxu0
        %v2099 = vadd.f32 %v2005, %v2098
        %v2100 = vpop.f32.mrf.mxu0
        %v2101 = vpop.f32.mrf.mxu0
        %v2102 = vadd.f32 %v2010, %v2101
        %v2103 = vpop.f32.mrf.mxu0
        %2104 = vmatprep.mubr.bf16.mxu0 0
        %2105 = vmatmul.mubr.bf16.gmra.mxu0 %v2050
        %v2106 = vpop.f32.mrf.mxu0
        %v2107 = vadd.f32 %v2015, %v2106
        %v2108 = vpop.f32.mrf.mxu0
        %v2109 = vpop.f32.mrf.mxu0
        %v2110 = vadd.f32 %v2020, %v2109
        %v2111 = vpop.f32.mrf.mxu0
        %2112 = vmatprep.mubr.bf16.mxu0 0
        %2113 = vmatmul.mubr.bf16.gmra.mxu0 %v2051
        %v2114 = vpop.f32.mrf.mxu0
        %v2115 = vadd.f32 %v2025, %v2114
        %v2116 = vpop.f32.mrf.mxu0
        %v2117 = vpop.f32.mrf.mxu0
        %v2118 = vadd.f32 %v2030, %v2117
        %v2119 = vpop.f32.mrf.mxu0
        %2120 = vdwg.mxu0
        %v2121 = vmul.f32 %v2091, 0.5
        %v2122 = vmul.f32 %v2094, 0.5
        %v2123 = vmul.f32 %v2099, 0.5
        %v2124 = vmul.f32 %v2102, 0.5
        %v2125 = vmul.f32 %v2107, 0.5
        %v2126 = vmul.f32 %v2110, 0.5
        %v2127 = vmul.f32 %v2115, 0.5
        %v2128 = vmul.f32 %v2118, 0.5
        %v2129 = vtanh.pop %v2121
        %v2130 = vtanh.pop %v2122
        %v2131 = vtanh.pop %v2123
        %v2132 = vtanh.pop %v2124
        %v2133 = vtanh.pop %v2125
        %v2134 = vtanh.pop %v2126
        %v2135 = vtanh.pop %v2127
        %v2136 = vtanh.pop %v2128
        %v2137 = vadd.f32 %v2129, 1.0
        %v2138 = vadd.f32 %v2130, 1.0
        %v2139 = vadd.f32 %v2131, 1.0
        %v2140 = vadd.f32 %v2132, 1.0
        %v2141 = vadd.f32 %v2133, 1.0
        %v2142 = vadd.f32 %v2134, 1.0
        %v2143 = vadd.f32 %v2135, 1.0
        %v2144 = vadd.f32 %v2136, 1.0
        %v2145 = vmul.f32 %v2137, 0.5
        %v2146 = vmul.f32 %v2138, 0.5
        %v2147 = vmul.f32 %v2139, 0.5
        %v2148 = vmul.f32 %v2140, 0.5
        %v2149 = vmul.f32 %v2141, 0.5
        %v2150 = vmul.f32 %v2142, 0.5
        %v2151 = vmul.f32 %v2143, 0.5
        %v2152 = vmul.f32 %v2144, 0.5
        %v2153 = vmul.f32 %v2091, %v2145
        %v2154 = vmul.f32 %v2094, %v2146
        %v2155 = vmul.f32 %v2099, %v2147
        %v2156 = vmul.f32 %v2102, %v2148
        %v2157 = vmul.f32 %v2107, %v2149
        %v2158 = vmul.f32 %v2110, %v2150
        %v2159 = vmul.f32 %v2115, %v2151
        %v2160 = vmul.f32 %v2118, %v2152
        %v2161 = vpack.c.bf16 %v2154, %v2153
        %v2162 = vpack.c.bf16 %v2156, %v2155
        %v2163 = vpack.c.bf16 %v2158, %v2157
        %v2164 = vpack.c.bf16 %v2160, %v2159
        %v2165 = vld [vmem:[%s12] sm:$0xf]
        %v2166 = vld [vmem:[%s12 + $0x4] sm:$0xf]
        %v2167 = vld [vmem:[%s12 + $0x8] sm:$0xf]
        %v2168 = vld [vmem:[%s12 + $0xc] sm:$0xf]
        %v2169 = vld [vmem:[%s12 + $0x10] sm:$0xf]
        %v2170 = vld [vmem:[%s12 + $0x14] sm:$0xf]
        %v2171 = vld [vmem:[%s12 + $0x18] sm:$0xf]
        %v2172 = vld [vmem:[%s12 + $0x1c] sm:$0xf]
        %v2173 = vld [vmem:[%s12 + $0x20] sm:$0xf]
        %v2174 = vld [vmem:[%s12 + $0x24] sm:$0xf]
        %v2175 = vld [vmem:[%s12 + $0x28] sm:$0xf]
        %v2176 = vld [vmem:[%s12 + $0x2c] sm:$0xf]
        %v2177 = vld [vmem:[%s12 + $0x30] sm:$0xf]
        %v2178 = vld [vmem:[%s12 + $0x34] sm:$0xf]
        %v2179 = vld [vmem:[%s12 + $0x38] sm:$0xf]
        %v2180 = vld [vmem:[%s12 + $0x3c] sm:$0xf]
        %v2181 = vld [vmem:[%s13] sm:$0xff]
        %v2182 = vld [vmem:[%s13 + $0x8] sm:$0xff]
        %v2183 = vld [vmem:[%s13 + $0x10] sm:$0xff]
        %v2184 = vld [vmem:[%s13 + $0x18] sm:$0xff]
        %v2185 = vld [vmem:[%s13 + $0x20] sm:$0xff]
        %v2186 = vld [vmem:[%s13 + $0x28] sm:$0xff]
        %v2187 = vld [vmem:[%s13 + $0x30] sm:$0xff]
        %v2188 = vld [vmem:[%s13 + $0x38] sm:$0xff]
        %v2189 = vld [vmem:[%s13 + $0x40] sm:$0xff]
        %v2190 = vld [vmem:[%s13 + $0x48] sm:$0xff]
        %v2191 = vld [vmem:[%s13 + $0x50] sm:$0xff]
        %v2192 = vld [vmem:[%s13 + $0x58] sm:$0xff]
        %v2193 = vld [vmem:[%s13 + $0x60] sm:$0xff]
        %v2194 = vld [vmem:[%s13 + $0x68] sm:$0xff]
        %v2195 = vld [vmem:[%s13 + $0x70] sm:$0xff]
        %v2196 = vld [vmem:[%s13 + $0x78] sm:$0xff]
        %2198 = vset.pattern.permute.xlu0 0
        %2199 = vperm.xlu0 %2198, %v2181
        %v2200 = vpop.permute.xlu0 %2199
        %2203 = vset.pattern.permute.xlu0 0
        %2204 = vperm.xlu0 %2203, %v2182
        %v2205 = vpop.permute.xlu0 %2204
        %2208 = vset.pattern.permute.xlu0 0
        %2209 = vperm.xlu0 %2208, %v2183
        %v2210 = vpop.permute.xlu0 %2209
        %2213 = vset.pattern.permute.xlu0 0
        %2214 = vperm.xlu0 %2213, %v2184
        %v2215 = vpop.permute.xlu0 %2214
        %2218 = vset.pattern.permute.xlu0 0
        %2219 = vperm.xlu0 %2218, %v2185
        %v2220 = vpop.permute.xlu0 %2219
        %2223 = vset.pattern.permute.xlu0 0
        %2224 = vperm.xlu0 %2223, %v2186
        %v2225 = vpop.permute.xlu0 %2224
        %2228 = vset.pattern.permute.xlu0 0
        %2229 = vperm.xlu0 %2228, %v2187
        %v2230 = vpop.permute.xlu0 %2229
        %2233 = vset.pattern.permute.xlu0 0
        %2234 = vperm.xlu0 %2233, %v2188
        %v2235 = vpop.permute.xlu0 %2234
        %2238 = vset.pattern.permute.xlu0 0
        %2239 = vperm.xlu0 %2238, %v2189
        %v2240 = vpop.permute.xlu0 %2239
        %2243 = vset.pattern.permute.xlu0 0
        %2244 = vperm.xlu0 %2243, %v2190
        %v2245 = vpop.permute.xlu0 %2244
        %2248 = vset.pattern.permute.xlu0 0
        %2249 = vperm.xlu0 %2248, %v2191
        %v2250 = vpop.permute.xlu0 %2249
        %2253 = vset.pattern.permute.xlu0 0
        %2254 = vperm.xlu0 %2253, %v2192
        %v2255 = vpop.permute.xlu0 %2254
        %2258 = vset.pattern.permute.xlu0 0
        %2259 = vperm.xlu0 %2258, %v2193
        %v2260 = vpop.permute.xlu0 %2259
        %2263 = vset.pattern.permute.xlu0 0
        %2264 = vperm.xlu0 %2263, %v2194
        %v2265 = vpop.permute.xlu0 %2264
        %2268 = vset.pattern.permute.xlu0 0
        %2269 = vperm.xlu0 %2268, %v2195
        %v2270 = vpop.permute.xlu0 %2269
        %2273 = vset.pattern.permute.xlu0 0
        %2274 = vperm.xlu0 %2273, %v2196
        %v2275 = vpop.permute.xlu0 %2274
        %v2293 = vunpack.c.l.b16 %v2165
        %v2294 = vunpack.c.l.b16 %v2166
        %v2295 = vunpack.c.l.b16 %v2167
        %v2296 = vunpack.c.l.b16 %v2168
        %v2297 = vunpack.c.l.b16 %v2169
        %v2298 = vunpack.c.l.b16 %v2170
        %v2299 = vunpack.c.l.b16 %v2171
        %v2300 = vunpack.c.l.b16 %v2172
        %v2301 = vunpack.c.l.b16 %v2173
        %v2302 = vunpack.c.l.b16 %v2174
        %v2303 = vunpack.c.l.b16 %v2175
        %v2304 = vunpack.c.l.b16 %v2176
        %v2305 = vunpack.c.l.b16 %v2177
        %v2306 = vunpack.c.l.b16 %v2178
        %v2307 = vunpack.c.l.b16 %v2179
        %v2308 = vunpack.c.l.b16 %v2180
        %v2309 = vpack.c.b16 %v2294, %v2293
        %v2310 = vpack.c.b16 %v2296, %v2295
        %v2311 = vpack.c.b16 %v2298, %v2297
        %v2312 = vpack.c.b16 %v2300, %v2299
        %v2313 = vpack.c.b16 %v2302, %v2301
        %v2314 = vpack.c.b16 %v2304, %v2303
        %v2315 = vpack.c.b16 %v2306, %v2305
        %v2316 = vpack.c.b16 %v2308, %v2307
        %v2318 = vsel %vm1184, %v2309, 0
        %v2321 = vsel %vm1184, %v2310, 0
        %v2324 = vsel %vm1184, %v2311, 0
        %v2327 = vsel %vm1184, %v2312, 0
        %v2330 = vsel %vm1184, %v2313, 0
        %v2333 = vsel %vm1184, %v2314, 0
        %v2336 = vsel %vm1184, %v2315, 0
        %v2339 = vsel %vm1184, %v2316, 0
        %2341 = vmatprep.subr.bf16.mxu0 0
        %2342 = vmatpush1.bf16.msra.mxu0 0
        %2343 = vmatprep.subr.bf16.mxu0 0
        %2344 = vmatpush1.bf16.msra.mxu0 0
        %2345 = vmatprep.subr.bf16.mxu0 0
        %2346 = vmatpush1.bf16.msra.mxu0 0
        %2347 = vmatprep.subr.bf16.mxu0 0
        %2348 = vmatpush1.bf16.msra.mxu0 0
        %2349 = vmatprep.subr.bf16.mxu0 0
        %2350 = vmatpush1.bf16.msra.mxu0 %v2164
        %2351 = vmatprep.subr.bf16.mxu0 0
        %2352 = vmatpush1.bf16.msra.mxu0 %v2163
        %2353 = vmatprep.subr.bf16.mxu0 0
        %2354 = vmatpush1.bf16.msra.mxu0 %v2162
        %2355 = vmatprep.subr.bf16.mxu0 0
        %2356 = vmatpush1.bf16.msra.mxu0 %v2161
        %2357 = vmatprep.subr.bf16.mxu0 0
        %2358 = vmatpush2.bf16.msra.mxu0 0
        %2359 = vmatprep.subr.bf16.mxu0 0
        %2360 = vmatpush2.bf16.msra.mxu0 0
        %2361 = vmatprep.subr.bf16.mxu0 0
        %2362 = vmatpush2.bf16.msra.mxu0 0
        %2363 = vmatprep.subr.bf16.mxu0 0
        %2364 = vmatpush2.bf16.msra.mxu0 0
        %2365 = vmatprep.subr.bf16.mxu0 0
        %2366 = vmatpush2.bf16.msra.mxu0 0
        %2367 = vmatprep.subr.bf16.mxu0 0
        %2368 = vmatpush2.bf16.msra.mxu0 0
        %2369 = vmatprep.subr.bf16.mxu0 0
        %2370 = vmatpush2.bf16.msra.mxu0 0
        %2371 = vmatprep.subr.bf16.mxu0 0
        %2372 = vmatpush2.bf16.msra.mxu0 0
        %2373 = vmatprep.mubr.bf16.mxu0 0
        %2374 = vmatmul.mubr.bf16.gmra.mxu0 %v2318
        %v2375 = vpop.f32.mrf.mxu0
        %v2376 = vadd.f32 %v2200, %v2375
        %v2377 = vpop.f32.mrf.mxu0
        %v2378 = vpop.f32.mrf.mxu0
        %v2379 = vadd.f32 %v2205, %v2378
        %v2380 = vpop.f32.mrf.mxu0
        %2381 = vmatprep.mubr.bf16.mxu0 0
        %2382 = vmatmul.mubr.bf16.gmra.mxu0 %v2321
        %v2383 = vpop.f32.mrf.mxu0
        %v2384 = vadd.f32 %v2210, %v2383
        %v2385 = vpop.f32.mrf.mxu0
        %v2386 = vpop.f32.mrf.mxu0
        %v2387 = vadd.f32 %v2215, %v2386
        %v2388 = vpop.f32.mrf.mxu0
        %2389 = vmatprep.mubr.bf16.mxu0 0
        %2390 = vmatmul.mubr.bf16.gmra.mxu0 %v2324
        %v2391 = vpop.f32.mrf.mxu0
        %v2392 = vadd.f32 %v2220, %v2391
        %v2393 = vpop.f32.mrf.mxu0
        %v2394 = vpop.f32.mrf.mxu0
        %v2395 = vadd.f32 %v2225, %v2394
        %v2396 = vpop.f32.mrf.mxu0
        %2397 = vmatprep.mubr.bf16.mxu0 0
        %2398 = vmatmul.mubr.bf16.gmra.mxu0 %v2327
        %v2399 = vpop.f32.mrf.mxu0
        %v2400 = vadd.f32 %v2230, %v2399
        %v2401 = vpop.f32.mrf.mxu0
        %v2402 = vpop.f32.mrf.mxu0
        %v2403 = vadd.f32 %v2235, %v2402
        %v2404 = vpop.f32.mrf.mxu0
        %2405 = vmatprep.mubr.bf16.mxu0 0
        %2406 = vmatmul.mubr.bf16.gmra.mxu0 %v2330
        %v2407 = vpop.f32.mrf.mxu0
        %v2408 = vadd.f32 %v2240, %v2407
        %v2409 = vpop.f32.mrf.mxu0
        %v2410 = vpop.f32.mrf.mxu0
        %v2411 = vadd.f32 %v2245, %v2410
        %v2412 = vpop.f32.mrf.mxu0
        %2413 = vmatprep.mubr.bf16.mxu0 0
        %2414 = vmatmul.mubr.bf16.gmra.mxu0 %v2333
        %v2415 = vpop.f32.mrf.mxu0
        %v2416 = vadd.f32 %v2250, %v2415
        %v2417 = vpop.f32.mrf.mxu0
        %v2418 = vpop.f32.mrf.mxu0
        %v2419 = vadd.f32 %v2255, %v2418
        %v2420 = vpop.f32.mrf.mxu0
        %2421 = vmatprep.mubr.bf16.mxu0 0
        %2422 = vmatmul.mubr.bf16.gmra.mxu0 %v2336
        %v2423 = vpop.f32.mrf.mxu0
        %v2424 = vadd.f32 %v2260, %v2423
        %v2425 = vpop.f32.mrf.mxu0
        %v2426 = vpop.f32.mrf.mxu0
        %v2427 = vadd.f32 %v2265, %v2426
        %v2428 = vpop.f32.mrf.mxu0
        %2429 = vmatprep.mubr.bf16.mxu0 0
        %2430 = vmatmul.mubr.bf16.gmra.mxu0 %v2339
        %v2431 = vpop.f32.mrf.mxu0
        %v2432 = vadd.f32 %v2270, %v2431
        %v2433 = vpop.f32.mrf.mxu0
        %v2434 = vpop.f32.mrf.mxu0
        %v2435 = vadd.f32 %v2275, %v2434
        %v2436 = vpop.f32.mrf.mxu0
        %2437 = vdwg.mxu0
        %v2438 = vmul.f32 %v2376, 0.5
        %v2439 = vmul.f32 %v2379, 0.5
        %v2440 = vmul.f32 %v2384, 0.5
        %v2441 = vmul.f32 %v2387, 0.5
        %v2442 = vmul.f32 %v2392, 0.5
        %v2443 = vmul.f32 %v2395, 0.5
        %v2444 = vmul.f32 %v2400, 0.5
        %v2445 = vmul.f32 %v2403, 0.5
        %v2446 = vmul.f32 %v2408, 0.5
        %v2447 = vmul.f32 %v2411, 0.5
        %v2448 = vmul.f32 %v2416, 0.5
        %v2449 = vmul.f32 %v2419, 0.5
        %v2450 = vmul.f32 %v2424, 0.5
        %v2451 = vmul.f32 %v2427, 0.5
        %v2452 = vmul.f32 %v2432, 0.5
        %v2453 = vmul.f32 %v2435, 0.5
        %v2454 = vtanh.pop %v2438
        %v2455 = vtanh.pop %v2439
        %v2456 = vtanh.pop %v2440
        %v2457 = vtanh.pop %v2441
        %v2458 = vtanh.pop %v2442
        %v2459 = vtanh.pop %v2443
        %v2460 = vtanh.pop %v2444
        %v2461 = vtanh.pop %v2445
        %v2462 = vtanh.pop %v2446
        %v2463 = vtanh.pop %v2447
        %v2464 = vtanh.pop %v2448
        %v2465 = vtanh.pop %v2449
        %v2466 = vtanh.pop %v2450
        %v2467 = vtanh.pop %v2451
        %v2468 = vtanh.pop %v2452
        %v2469 = vtanh.pop %v2453
        %v2470 = vadd.f32 %v2454, 1.0
        %v2471 = vadd.f32 %v2455, 1.0
        %v2472 = vadd.f32 %v2456, 1.0
        %v2473 = vadd.f32 %v2457, 1.0
        %v2474 = vadd.f32 %v2458, 1.0
        %v2475 = vadd.f32 %v2459, 1.0
        %v2476 = vadd.f32 %v2460, 1.0
        %v2477 = vadd.f32 %v2461, 1.0
        %v2478 = vadd.f32 %v2462, 1.0
        %v2479 = vadd.f32 %v2463, 1.0
        %v2480 = vadd.f32 %v2464, 1.0
        %v2481 = vadd.f32 %v2465, 1.0
        %v2482 = vadd.f32 %v2466, 1.0
        %v2483 = vadd.f32 %v2467, 1.0
        %v2484 = vadd.f32 %v2468, 1.0
        %v2485 = vadd.f32 %v2469, 1.0
        %v2486 = vmul.f32 %v2470, 0.5
        %v2487 = vmul.f32 %v2471, 0.5
        %v2488 = vmul.f32 %v2472, 0.5
        %v2489 = vmul.f32 %v2473, 0.5
        %v2490 = vmul.f32 %v2474, 0.5
        %v2491 = vmul.f32 %v2475, 0.5
        %v2492 = vmul.f32 %v2476, 0.5
        %v2493 = vmul.f32 %v2477, 0.5
        %v2494 = vmul.f32 %v2478, 0.5
        %v2495 = vmul.f32 %v2479, 0.5
        %v2496 = vmul.f32 %v2480, 0.5
        %v2497 = vmul.f32 %v2481, 0.5
        %v2498 = vmul.f32 %v2482, 0.5
        %v2499 = vmul.f32 %v2483, 0.5
        %v2500 = vmul.f32 %v2484, 0.5
        %v2501 = vmul.f32 %v2485, 0.5
        %v2502 = vmul.f32 %v2376, %v2486
        %v2503 = vmul.f32 %v2379, %v2487
        %v2504 = vmul.f32 %v2384, %v2488
        %v2505 = vmul.f32 %v2387, %v2489
        %v2506 = vmul.f32 %v2392, %v2490
        %v2507 = vmul.f32 %v2395, %v2491
        %v2508 = vmul.f32 %v2400, %v2492
        %v2509 = vmul.f32 %v2403, %v2493
        %v2510 = vmul.f32 %v2408, %v2494
        %v2511 = vmul.f32 %v2411, %v2495
        %v2512 = vmul.f32 %v2416, %v2496
        %v2513 = vmul.f32 %v2419, %v2497
        %v2514 = vmul.f32 %v2424, %v2498
        %v2515 = vmul.f32 %v2427, %v2499
        %v2516 = vmul.f32 %v2432, %v2500
        %v2517 = vmul.f32 %v2435, %v2501
        %2518 = vst [vmem:[%s753] sm:$0xff] %v2502
        %2519 = vst [vmem:[%s753 + $0x8] sm:$0xff] %v2503
        %2520 = vst [vmem:[%s753 + $0x10] sm:$0xff] %v2504
        %2521 = vst [vmem:[%s753 + $0x18] sm:$0xff] %v2505
        %2522 = vst [vmem:[%s753 + $0x20] sm:$0xff] %v2506
        %2523 = vst [vmem:[%s753 + $0x28] sm:$0xff] %v2507
        %2524 = vst [vmem:[%s753 + $0x30] sm:$0xff] %v2508
        %2525 = vst [vmem:[%s753 + $0x38] sm:$0xff] %v2509
        %2526 = vst [vmem:[%s753 + $0x40] sm:$0xff] %v2510
        %2527 = vst [vmem:[%s753 + $0x48] sm:$0xff] %v2511
        %2528 = vst [vmem:[%s753 + $0x50] sm:$0xff] %v2512
        %2529 = vst [vmem:[%s753 + $0x58] sm:$0xff] %v2513
        %2530 = vst [vmem:[%s753 + $0x60] sm:$0xff] %v2514
        %2531 = vst [vmem:[%s753 + $0x68] sm:$0xff] %v2515
        %2532 = vst [vmem:[%s753 + $0x70] sm:$0xff] %v2516
        %2533 = vst [vmem:[%s753 + $0x78] sm:$0xff] %v2517
        %s2534 = sand.u32 %s357, 1
        %s2535 = sand.u32 %s357, 1
        %s2536 = smul.addr %s2535, 128
        %s2537 = scalar_lea.vmem [#allocation9], %s2536
        // Predicated region
        $region171: #{cswf_forward.1} parent=149 // pred_check
          %p2538 = pneg %p367
        $region172: #{cswf_forward.1} parent=149 // pred_check_branch
          %2540 = sbr.rel (%p2538) target = $region174
        $region173: #{cswf_forward.1} parent=149 // pred_region
          %s2541 = smul.addr %s31, 32
          %s2542 = sadd.s32 %s32, %s2541
          %s2543 = smul.addr %s2542, 8
          %s2544 = scalar_lea.vmem %s14, %s2543
          // Predicated region
          $region175: #{cswf_forward.1} parent=173 // pred_check
            _
          $region176: #{cswf_forward.1} parent=173 // pred_check_branch
            %2546 = sbr.rel (0) target = $region178
          $region177: #{cswf_forward.1} parent=173 // pred_region
            // Predicated region
            $region179: #{cswf_forward.1} parent=177 // pred_check
              _
            $region180: #{cswf_forward.1} parent=177 // pred_check_branch
              %2548 = sbr.rel (0) target = $region182
            $region181: #{cswf_forward.1} parent=177 // pred_region
              // Predicated region
              $region194: #{cswf_forward.1} parent=181 // pred_check
                _
              $region195: #{cswf_forward.1} parent=181 // pred_check_branch
                %2594 = sbr.rel (0) target = $region197
              $region196: #{cswf_forward.1} parent=181 // pred_region
                loop: start=0, step=1, limit=1
                $region198: #{cswf_forward.1} parent=196 // loop_pre_header
                  _
                $region199: #{cswf_forward.1} parent=196 // loop_header
                  %s2596 = sphi 0, %s2600
                  %p2597 = scmp.ge.s32.totalorder %s2596, 1
                  %s2601 = sphi %s2537, %s2537
                  %s2602 = sphi %s2544, %s2544
                $region200: #{cswf_forward.1} parent=196 // loop_header_branch
                  %2599 = sbr.rel (%p2597) target = $region204
                $region201: #{cswf_forward.1} parent=196 // loop_body
                  %v2603 = vld [vmem:[%s2601] sm:$0xff]
                  %2604 = vst [vmem:[%s2602] sm:$0xff] %v2603
                  %v2605 = vld [vmem:[%s2601 + $0x8] sm:$0xff]
                  %2606 = vst [vmem:[%s2602 + $0x10] sm:$0xff] %v2605
                  %v2607 = vld [vmem:[%s2601 + $0x10] sm:$0xff]
                  %2608 = vst [vmem:[%s2602 + $0x20] sm:$0xff] %v2607
                  %v2609 = vld [vmem:[%s2601 + $0x18] sm:$0xff]
                  %2610 = vst [vmem:[%s2602 + $0x30] sm:$0xff] %v2609
                  %v2611 = vld [vmem:[%s2601 + $0x20] sm:$0xff]
                  %2612 = vst [vmem:[%s2602 + $0x40] sm:$0xff] %v2611
                  %v2613 = vld [vmem:[%s2601 + $0x28] sm:$0xff]
                  %2614 = vst [vmem:[%s2602 + $0x50] sm:$0xff] %v2613
                  %v2615 = vld [vmem:[%s2601 + $0x30] sm:$0xff]
                  %2616 = vst [vmem:[%s2602 + $0x60] sm:$0xff] %v2615
                  %v2617 = vld [vmem:[%s2601 + $0x38] sm:$0xff]
                  %2618 = vst [vmem:[%s2602 + $0x70] sm:$0xff] %v2617
                  %v2619 = vld [vmem:[%s2601 + $0x40] sm:$0xff]
                  %2620 = vst [vmem:[%s2602 + $0x80] sm:$0xff] %v2619
                  %v2621 = vld [vmem:[%s2601 + $0x48] sm:$0xff]
                  %2622 = vst [vmem:[%s2602 + $0x90] sm:$0xff] %v2621
                  %v2623 = vld [vmem:[%s2601 + $0x50] sm:$0xff]
                  %2624 = vst [vmem:[%s2602 + $0xa0] sm:$0xff] %v2623
                  %v2625 = vld [vmem:[%s2601 + $0x58] sm:$0xff]
                  %2626 = vst [vmem:[%s2602 + $0xb0] sm:$0xff] %v2625
                  %v2627 = vld [vmem:[%s2601 + $0x60] sm:$0xff]
                  %2628 = vst [vmem:[%s2602 + $0xc0] sm:$0xff] %v2627
                  %v2629 = vld [vmem:[%s2601 + $0x68] sm:$0xff]
                  %2630 = vst [vmem:[%s2602 + $0xd0] sm:$0xff] %v2629
                  %v2631 = vld [vmem:[%s2601 + $0x70] sm:$0xff]
                  %2632 = vst [vmem:[%s2602 + $0xe0] sm:$0xff] %v2631
                  %v2633 = vld [vmem:[%s2601 + $0x78] sm:$0xff]
                  %2634 = vst [vmem:[%s2602 + $0xf0] sm:$0xff] %v2633
                $region202: #{cswf_forward.1} parent=196 // loop_footer
                  %s2600 = sadd.s32 1, %s2596
                $region203: #{cswf_forward.1} parent=196 // loop_footer_branch
                  %2595 = sbr.rel target = $region199
                $region204: #{cswf_forward.1} parent=196 // loop_exit
                  _
              $region197: #{cswf_forward.1} parent=181 // pred_fallthru
                _
              // Predicated region
              $region205: #{cswf_forward.1} parent=181 // pred_check
                _
              $region206: #{cswf_forward.1} parent=181 // pred_check_branch
                %2636 = sbr.rel target = $region208
              $region207: #{cswf_forward.1} parent=181 // pred_region
                _
              $region208: #{cswf_forward.1} parent=181 // pred_fallthru
                _
            $region182: #{cswf_forward.1} parent=177 // pred_fallthru
              _
            // Predicated region
            $region183: #{cswf_forward.1} parent=177 // pred_check
              _
            $region184: #{cswf_forward.1} parent=177 // pred_check_branch
              %2550 = sbr.rel target = $region186
            $region185: #{cswf_forward.1} parent=177 // pred_region
              %s2552 = ssub.s32 256, 1
              loop: start=0, step=1, limit=1
              $region187: #{cswf_forward.1} parent=185 // loop_pre_header
                _
              $region188: #{cswf_forward.1} parent=185 // loop_header
                %s2554 = sphi 0, %s2558
                %p2555 = scmp.ge.s32.totalorder %s2554, 1
                %s2559 = sphi %s2537, %s2537
                %s2560 = sphi %s2544, %s2544
              $region189: #{cswf_forward.1} parent=185 // loop_header_branch
                %2557 = sbr.rel (%p2555) target = $region193
              $region190: #{cswf_forward.1} parent=185 // loop_body
                %v2561 = vld [vmem:[%s2559] sm:%s2552]
                %2562 = vst [vmem:[%s2560] sm:%s2552] %v2561
                %v2563 = vld [vmem:[%s2559 + $0x8] sm:%s2552]
                %2564 = vst [vmem:[%s2560 + $0x10] sm:%s2552] %v2563
                %v2565 = vld [vmem:[%s2559 + $0x10] sm:%s2552]
                %2566 = vst [vmem:[%s2560 + $0x20] sm:%s2552] %v2565
                %v2567 = vld [vmem:[%s2559 + $0x18] sm:%s2552]
                %2568 = vst [vmem:[%s2560 + $0x30] sm:%s2552] %v2567
                %v2569 = vld [vmem:[%s2559 + $0x20] sm:%s2552]
                %2570 = vst [vmem:[%s2560 + $0x40] sm:%s2552] %v2569
                %v2571 = vld [vmem:[%s2559 + $0x28] sm:%s2552]
                %2572 = vst [vmem:[%s2560 + $0x50] sm:%s2552] %v2571
                %v2573 = vld [vmem:[%s2559 + $0x30] sm:%s2552]
                %2574 = vst [vmem:[%s2560 + $0x60] sm:%s2552] %v2573
                %v2575 = vld [vmem:[%s2559 + $0x38] sm:%s2552]
                %2576 = vst [vmem:[%s2560 + $0x70] sm:%s2552] %v2575
                %v2577 = vld [vmem:[%s2559 + $0x40] sm:%s2552]
                %2578 = vst [vmem:[%s2560 + $0x80] sm:%s2552] %v2577
                %v2579 = vld [vmem:[%s2559 + $0x48] sm:%s2552]
                %2580 = vst [vmem:[%s2560 + $0x90] sm:%s2552] %v2579
                %v2581 = vld [vmem:[%s2559 + $0x50] sm:%s2552]
                %2582 = vst [vmem:[%s2560 + $0xa0] sm:%s2552] %v2581
                %v2583 = vld [vmem:[%s2559 + $0x58] sm:%s2552]
                %2584 = vst [vmem:[%s2560 + $0xb0] sm:%s2552] %v2583
                %v2585 = vld [vmem:[%s2559 + $0x60] sm:%s2552]
                %2586 = vst [vmem:[%s2560 + $0xc0] sm:%s2552] %v2585
                %v2587 = vld [vmem:[%s2559 + $0x68] sm:%s2552]
                %2588 = vst [vmem:[%s2560 + $0xd0] sm:%s2552] %v2587
                %v2589 = vld [vmem:[%s2559 + $0x70] sm:%s2552]
                %2590 = vst [vmem:[%s2560 + $0xe0] sm:%s2552] %v2589
                %v2591 = vld [vmem:[%s2559 + $0x78] sm:%s2552]
                %2592 = vst [vmem:[%s2560 + $0xf0] sm:%s2552] %v2591
              $region191: #{cswf_forward.1} parent=185 // loop_footer
                %s2558 = sadd.s32 1, %s2554
              $region192: #{cswf_forward.1} parent=185 // loop_footer_branch
                %2553 = sbr.rel target = $region188
              $region193: #{cswf_forward.1} parent=185 // loop_exit
                _
            $region186: #{cswf_forward.1} parent=177 // pred_fallthru
              _
          $region178: #{cswf_forward.1} parent=173 // pred_fallthru
            _
          %2637 = vnop
        $region174: #{cswf_forward.1} parent=149 // pred_fallthru
          _
      $region150: #{cswf_forward.1} parent=5 // pred_fallthru
        _
      %p2638 = scmp.le.s32.totalorder 2, %s22
      // Predicated region
      $region209: #{cswf_forward.1} parent=5 // pred_check
        %p2639 = pneg %p2638
      $region210: #{cswf_forward.1} parent=5 // pred_check_branch
        %2641 = sbr.rel (%p2639) target = $region212
      $region211: #{cswf_forward.1} parent=5 // pred_region
        %s2642 = ssub.s32 %s22, 2
        // Predicated region
        $region213: #{cswf_forward.1} parent=211 // pred_check
          %p2643 = pneg %p373
        $region214: #{cswf_forward.1} parent=211 // pred_check_branch
          %2645 = sbr.rel (%p2643) target = $region216
        $region215: #{cswf_forward.1} parent=211 // pred_region
          %s2646 = sand.u32 %s358, 1
          %s2647 = sand.u32 %s358, 1
          %s2648 = smul.addr %s2647, 128
          %s2649 = scalar_lea.vmem [#allocation9], %s2648
        $region216: #{cswf_forward.1} parent=211 // pred_fallthru
          _
      $region212: #{cswf_forward.1} parent=5 // pred_fallthru
        _
    $region6: #{cswf_forward.1} parent=1 // loop_footer
      %s26 = sadd.s32 1, %s22
    $region7: #{cswf_forward.1} parent=1 // loop_footer_branch
      %21 = sbr.rel target = $region3
    $region8: #{cswf_forward.1} parent=1 // loop_exit
      _
    %2650 = vsyncpa [#allocation5], 1
    %s2651 = scalar_lea.sflag [#allocation5], 1
    %2652 = vsyncpa %s2651, 1
    %2653 = vsyncpa [#allocation7], 1

</llo_original>
